<compile_context>
chip_gen: v5e
topology: v5e:2x2
jax: 0.10.0
libtpu: 0.0.40
codegen_flags: <defaults>
</compile_context>

<pallas_src>
import functools

import jax
import jax.numpy as jnp
from jax.experimental import pallas as pl
from jax.experimental.pallas import tpu as pltpu


def merge_block_kernel(x_ref, rc_ref, w1_ref, w2_ref, o_ref, *, height, width):
    # x_ref : (1, Cin,  L)    L = bn*HWp; bn batch elements folded on lanes
    # rc_ref: (2, L) int32    row / col index per lane (-4 sentinel on pad lanes)
    # w1_ref: (9, Cout, Cin)  conv1 weights, tap-major (tap k = ki*3 + kj)
    # w2_ref: (9, Cout, Cout) conv2 weights, tap-major
    # o_ref : (1, Cout, L)    lane-dense output
    L = x_ref.shape[2]
    row = rc_ref[0:1, :]                                   # (1, L) int32
    col = rc_ref[1:2, :]

    def conv3x3_lrelu(inp, w_ref):
        # inp: (C, L).  Tap (dy, dx) of a padding=1 3x3 conv reads the pixel
        # at flat offset dy*W + dx; a lane roll (XLU) plus a validity mask
        # (VPU compares on the row/col indices) realises that shift with zero
        # fill while staying lane-dense.  Per-tap matmuls accumulate straight
        # into f32 vregs -- no VMEM staging, no store->load round trip.
        cdt = inp.dtype
        acc = jnp.dot(w_ref[4], inp,                        # centre tap: no mask
                      preferred_element_type=jnp.float32)
        for k in range(9):
            if k == 4:
                continue
            dy, dx = k // 3 - 1, k % 3 - 1
            off = dy * width + dx
            valid = (((row + dy) >= 0) & ((row + dy) < height) &
                     ((col + dx) >= 0) & ((col + dx) < width))
            tap = pltpu.roll(inp, shift=(-off) % L, axis=1) * valid.astype(cdt)
            acc = acc + jnp.dot(w_ref[k], tap,
                                preferred_element_type=jnp.float32)
        return jnp.where(acc > 0, acc, 0.2 * acc)           # LeakyReLU(0.2), f32

    x = x_ref[0]                                             # (Cin, L)
    y1 = conv3x3_lrelu(x, w1_ref)                            # (Cout, L) f32
    y2 = conv3x3_lrelu(y1.astype(x.dtype), w2_ref)
    o_ref[0] = y2.astype(o_ref.dtype)


def merge_block(x_nchw, w1_oihw, w2_oihw, *, compute_dtype=None, lane_target=1024):
    """MergeBlock forward. x_nchw: (N, Cin, H, W); weights in PyTorch OIHW.

    compute_dtype: optional MXU-operand dtype (e.g. jnp.bfloat16 on v6e/v7x);
    accumulation and the LeakyReLU non-linearity stay float32 regardless.
    lane_target: soft cap on the fused lane width per grid step (bounds vreg
    pressure; leaves multiple grid steps for the 2 TCs on v7x when N is large).
    """
    N, Cin, H, W = x_nchw.shape
    Cout = w1_oihw.shape[0]
    HW = H * W
    HWp = ((HW + 127) // 128) * 128                          # lane-dense spatial pad
    cdt = jnp.dtype(compute_dtype) if compute_dtype is not None else x_nchw.dtype

    # Fold `bn` batch elements into the lane axis per grid step.
    bn = 1
    for d in range(1, N + 1):
        if N % d == 0 and d * HWp <= max(lane_target, HWp):
            bn = d
    num_chunks = N // bn
    L = bn * HWp

    # NCHW -> (num_chunks, Cin, bn*HWp): flatten spatial, zero-pad lanes to a
    # multiple of 128, fold bn elements into lanes (channels stay on sublanes
    # -> lane-dense matmul RHS and output stores).
    x_flat = x_nchw.reshape(N, Cin, HW).astype(cdt)
    if HWp != HW:
        x_flat = jnp.pad(x_flat, ((0, 0), (0, 0), (0, HWp - HW)))
    x_fold = (x_flat.reshape(num_chunks, bn, Cin, HWp)
              .transpose(0, 2, 1, 3)
              .reshape(num_chunks, Cin, L))

    # OIHW -> (9, Cout, C): tap-major weight blocks for the per-tap matmuls.
    w1_t = jnp.transpose(w1_oihw, (2, 3, 0, 1)).reshape(9, Cout, Cin).astype(cdt)
    w2_t = jnp.transpose(w2_oihw, (2, 3, 0, 1)).reshape(9, Cout, Cout).astype(cdt)

    # Per-lane row/col indices (tiny fetch-once input, constant index map);
    # pad lanes get a sentinel so every tap mask is 0 there.  The in-kernel
    # compares on these replace the old (9, 1, HW) pipelined mask array.
    l = jnp.arange(HWp, dtype=jnp.int32)
    in_img = l < HW
    row = jnp.where(in_img, l // W, -4)
    col = jnp.where(in_img, l % W, -4)
    rc = jnp.tile(jnp.stack([row, col]), (1, bn))            # (2, L) int32

    out_fold = pl.pallas_call(
        functools.partial(merge_block_kernel, height=H, width=W),
        out_shape=jax.ShapeDtypeStruct((num_chunks, Cout, L), x_nchw.dtype),
        grid_spec=pltpu.PrefetchScalarGridSpec(
            num_scalar_prefetch=0,
            grid=(num_chunks,),
            in_specs=[
                pl.BlockSpec((1, Cin, L), lambda n: (n, 0, 0)),
                pl.BlockSpec((2, L), lambda n: (0, 0)),
                pl.BlockSpec((9, Cout, Cin), lambda n: (0, 0, 0)),
                pl.BlockSpec((9, Cout, Cout), lambda n: (0, 0, 0)),
            ],
            out_specs=pl.BlockSpec((1, Cout, L), lambda n: (n, 0, 0)),
        ),
        compiler_params=pltpu.CompilerParams(
            dimension_semantics=("parallel",)),
    )(x_fold, rc, w1_t, w2_t)

    # (num_chunks, Cout, bn*HWp) -> NCHW, dropping the pad lanes.
    out = (out_fold.reshape(num_chunks, Cout, bn, HWp)
           .transpose(0, 2, 1, 3)
           .reshape(N, Cout, HWp)[:, :, :HW]
           .reshape(N, Cout, H, W))
    return out


def _reference(x_nchw, w1, w2):
    dn = jax.lax.conv_dimension_numbers(x_nchw.shape, w1.shape,
                                        ("NCHW", "OIHW", "NCHW"))
    y = jax.lax.conv_general_dilated(x_nchw, w1, (1, 1), ((1, 1), (1, 1)),
                                     dimension_numbers=dn)
    y = jnp.where(y > 0, y, 0.2 * y)
    y = jax.lax.conv_general_dilated(y, w2, (1, 1), ((1, 1), (1, 1)),
                                     dimension_numbers=dn)
    y = jnp.where(y > 0, y, 0.2 * y)
    return y


if __name__ == "__main__":
    N, Cin, Cout, H, W = 2, 4, 8, 16, 16

    key = jax.random.PRNGKey(0)
    kx, k1, k2 = jax.random.split(key, 3)
    x = jax.random.normal(kx, (N, Cin, H, W), dtype=jnp.float32)
    # Conv2d(in, out, 3, padding=1, bias=False) weights, PyTorch OIHW layout.
    w1 = jax.random.normal(k1, (Cout, Cin, 3, 3), dtype=jnp.float32) * 0.1
    w2 = jax.random.normal(k2, (Cout, Cout, 3, 3), dtype=jnp.float32) * 0.1

    # f32 everywhere to match the PyTorch module; pass compute_dtype=jnp.bfloat16
    # on v6e/v7x for bf16 MXU operands (f32 accumulation is kept).
    out = jax.block_until_ready(merge_block(x, w1, w2))
    ref = jax.block_until_ready(_reference(x, w1, w2))

    assert out.shape == ref.shape == (N, Cout, H, W)
    assert jnp.allclose(out, ref, atol=1e-3, rtol=1e-3), \
        "mismatch vs XLA conv reference"

    print("KERNEL_OK")
</pallas_src>

<mosaic_0001>
module attributes {stable_mosaic.version = 11 : i64} {
  func.func @merge_block_kernel(%arg0: i32, %arg1: memref<1x4x512xf32, #tpu.memory_space<vmem>>, %arg2: memref<2x512xi32, #tpu.memory_space<vmem>>, %arg3: memref<9x8x4xf32, #tpu.memory_space<vmem>>, %arg4: memref<9x8x8xf32, #tpu.memory_space<vmem>>, %arg5: memref<1x8x512xf32, #tpu.memory_space<vmem>>) attributes {dimension_semantics = [#tpu.dimension_semantics<parallel>], iteration_bounds = array<i64: 1>, scalar_prefetch = 0 : i64, scratch_operands = 0 : i64, tpu.core_type = #tpu.core_type<tc>, window_params = [{transform_indices = @transform_0, window_bounds = array<i64: 1, 4, 512>}, {pipeline_mode = #tpu.pipeline_mode<synchronous>, transform_indices = @transform_1, window_bounds = array<i64: 2, 512>}, {pipeline_mode = #tpu.pipeline_mode<synchronous>, transform_indices = @transform_2, window_bounds = array<i64: 9, 8, 4>}, {pipeline_mode = #tpu.pipeline_mode<synchronous>, transform_indices = @transform_3, window_bounds = array<i64: 9, 8, 8>}, {transform_indices = @transform_4, window_bounds = array<i64: 1, 8, 512>}]} {
    %c0 = arith.constant 0 : index
    %c0_0 = arith.constant 0 : index
    %0 = vector.load %arg2[%c0, %c0_0] : memref<2x512xi32, #tpu.memory_space<vmem>>, vector<1x512xi32>
    %c1 = arith.constant 1 : index
    %c0_1 = arith.constant 0 : index
    %1 = vector.load %arg2[%c1, %c0_1] : memref<2x512xi32, #tpu.memory_space<vmem>>, vector<1x512xi32>
    %c0_2 = arith.constant 0 : index
    %c0_3 = arith.constant 0 : index
    %c0_4 = arith.constant 0 : index
    %2 = vector.load %arg1[%c0_2, %c0_3, %c0_4] : memref<1x4x512xf32, #tpu.memory_space<vmem>>, vector<1x4x512xf32>
    %3 = vector.shape_cast %2 : vector<1x4x512xf32> to vector<4x512xf32>
    %c4 = arith.constant 4 : index
    %c0_5 = arith.constant 0 : index
    %c0_6 = arith.constant 0 : index
    %4 = vector.load %arg3[%c4, %c0_5, %c0_6] : memref<9x8x4xf32, #tpu.memory_space<vmem>>, vector<1x8x4xf32>
    %5 = vector.shape_cast %4 : vector<1x8x4xf32> to vector<8x4xf32>
    %cst = arith.constant dense<0.000000e+00> : vector<8x512xf32>
    %6 = tpu.matmul %5, %3, %cst {dimension_numbers = #tpu.dot_dimension_numbers<[1], [0], [0], [1], [0, 0, 1, 1], [], []>} : vector<8x4xf32>, vector<4x512xf32>, vector<8x512xf32> -> vector<8x512xf32>
    %c-1_i32 = arith.constant -1 : i32
    %7 = vector.broadcast %c-1_i32 : i32 to vector<1x512xi32>
    %8 = arith.addi %0, %7 : vector<1x512xi32>
    %c0_i32 = arith.constant 0 : i32
    %9 = vector.broadcast %c0_i32 : i32 to vector<1x512xi32>
    %10 = arith.cmpi sge, %8, %9 : vector<1x512xi32>
    %c-1_i32_7 = arith.constant -1 : i32
    %11 = vector.broadcast %c-1_i32_7 : i32 to vector<1x512xi32>
    %12 = arith.addi %0, %11 : vector<1x512xi32>
    %c16_i32 = arith.constant 16 : i32
    %13 = vector.broadcast %c16_i32 : i32 to vector<1x512xi32>
    %14 = arith.cmpi slt, %12, %13 : vector<1x512xi32>
    %15 = arith.andi %10, %14 : vector<1x512xi1>
    %c-1_i32_8 = arith.constant -1 : i32
    %16 = vector.broadcast %c-1_i32_8 : i32 to vector<1x512xi32>
    %17 = arith.addi %1, %16 : vector<1x512xi32>
    %c0_i32_9 = arith.constant 0 : i32
    %18 = vector.broadcast %c0_i32_9 : i32 to vector<1x512xi32>
    %19 = arith.cmpi sge, %17, %18 : vector<1x512xi32>
    %20 = arith.andi %15, %19 : vector<1x512xi1>
    %c-1_i32_10 = arith.constant -1 : i32
    %21 = vector.broadcast %c-1_i32_10 : i32 to vector<1x512xi32>
    %22 = arith.addi %1, %21 : vector<1x512xi32>
    %c16_i32_11 = arith.constant 16 : i32
    %23 = vector.broadcast %c16_i32_11 : i32 to vector<1x512xi32>
    %24 = arith.cmpi slt, %22, %23 : vector<1x512xi32>
    %25 = arith.andi %20, %24 : vector<1x512xi1>
    %c17_i32 = arith.constant 17 : i32
    %26 = tpu.dynamic_rotate %3 by %c17_i32 dim 1 : vector<4x512xf32>, i32 -> vector<4x512xf32>
    %27 = arith.extui %25 : vector<1x512xi1> to vector<1x512xi32>
    %28 = arith.sitofp %27 : vector<1x512xi32> to vector<1x512xf32>
    %29 = vector.broadcast %28 : vector<1x512xf32> to vector<4x512xf32>
    %30 = arith.mulf %26, %29 : vector<4x512xf32>
    %c0_12 = arith.constant 0 : index
    %c0_13 = arith.constant 0 : index
    %c0_14 = arith.constant 0 : index
    %31 = vector.load %arg3[%c0_12, %c0_13, %c0_14] : memref<9x8x4xf32, #tpu.memory_space<vmem>>, vector<1x8x4xf32>
    %32 = vector.shape_cast %31 : vector<1x8x4xf32> to vector<8x4xf32>
    %cst_15 = arith.constant dense<0.000000e+00> : vector<8x512xf32>
    %33 = tpu.matmul %32, %30, %cst_15 {dimension_numbers = #tpu.dot_dimension_numbers<[1], [0], [0], [1], [0, 0, 1, 1], [], []>} : vector<8x4xf32>, vector<4x512xf32>, vector<8x512xf32> -> vector<8x512xf32>
    %34 = arith.addf %6, %33 : vector<8x512xf32>
    %c-1_i32_16 = arith.constant -1 : i32
    %35 = vector.broadcast %c-1_i32_16 : i32 to vector<1x512xi32>
    %36 = arith.addi %0, %35 : vector<1x512xi32>
    %c0_i32_17 = arith.constant 0 : i32
    %37 = vector.broadcast %c0_i32_17 : i32 to vector<1x512xi32>
    %38 = arith.cmpi sge, %36, %37 : vector<1x512xi32>
    %c-1_i32_18 = arith.constant -1 : i32
    %39 = vector.broadcast %c-1_i32_18 : i32 to vector<1x512xi32>
    %40 = arith.addi %0, %39 : vector<1x512xi32>
    %c16_i32_19 = arith.constant 16 : i32
    %41 = vector.broadcast %c16_i32_19 : i32 to vector<1x512xi32>
    %42 = arith.cmpi slt, %40, %41 : vector<1x512xi32>
    %43 = arith.andi %38, %42 : vector<1x512xi1>
    %c0_i32_20 = arith.constant 0 : i32
    %44 = vector.broadcast %c0_i32_20 : i32 to vector<1x512xi32>
    %45 = arith.addi %1, %44 : vector<1x512xi32>
    %c0_i32_21 = arith.constant 0 : i32
    %46 = vector.broadcast %c0_i32_21 : i32 to vector<1x512xi32>
    %47 = arith.cmpi sge, %45, %46 : vector<1x512xi32>
    %48 = arith.andi %43, %47 : vector<1x512xi1>
    %c0_i32_22 = arith.constant 0 : i32
    %49 = vector.broadcast %c0_i32_22 : i32 to vector<1x512xi32>
    %50 = arith.addi %1, %49 : vector<1x512xi32>
    %c16_i32_23 = arith.constant 16 : i32
    %51 = vector.broadcast %c16_i32_23 : i32 to vector<1x512xi32>
    %52 = arith.cmpi slt, %50, %51 : vector<1x512xi32>
    %53 = arith.andi %48, %52 : vector<1x512xi1>
    %c16_i32_24 = arith.constant 16 : i32
    %54 = tpu.dynamic_rotate %3 by %c16_i32_24 dim 1 : vector<4x512xf32>, i32 -> vector<4x512xf32>
    %55 = arith.extui %53 : vector<1x512xi1> to vector<1x512xi32>
    %56 = arith.sitofp %55 : vector<1x512xi32> to vector<1x512xf32>
    %57 = vector.broadcast %56 : vector<1x512xf32> to vector<4x512xf32>
    %58 = arith.mulf %54, %57 : vector<4x512xf32>
    %c1_25 = arith.constant 1 : index
    %c0_26 = arith.constant 0 : index
    %c0_27 = arith.constant 0 : index
    %59 = vector.load %arg3[%c1_25, %c0_26, %c0_27] : memref<9x8x4xf32, #tpu.memory_space<vmem>>, vector<1x8x4xf32>
    %60 = vector.shape_cast %59 : vector<1x8x4xf32> to vector<8x4xf32>
    %cst_28 = arith.constant dense<0.000000e+00> : vector<8x512xf32>
    %61 = tpu.matmul %60, %58, %cst_28 {dimension_numbers = #tpu.dot_dimension_numbers<[1], [0], [0], [1], [0, 0, 1, 1], [], []>} : vector<8x4xf32>, vector<4x512xf32>, vector<8x512xf32> -> vector<8x512xf32>
    %62 = arith.addf %34, %61 : vector<8x512xf32>
    %c-1_i32_29 = arith.constant -1 : i32
    %63 = vector.broadcast %c-1_i32_29 : i32 to vector<1x512xi32>
    %64 = arith.addi %0, %63 : vector<1x512xi32>
    %c0_i32_30 = arith.constant 0 : i32
    %65 = vector.broadcast %c0_i32_30 : i32 to vector<1x512xi32>
    %66 = arith.cmpi sge, %64, %65 : vector<1x512xi32>
    %c-1_i32_31 = arith.constant -1 : i32
    %67 = vector.broadcast %c-1_i32_31 : i32 to vector<1x512xi32>
    %68 = arith.addi %0, %67 : vector<1x512xi32>
    %c16_i32_32 = arith.constant 16 : i32
    %69 = vector.broadcast %c16_i32_32 : i32 to vector<1x512xi32>
    %70 = arith.cmpi slt, %68, %69 : vector<1x512xi32>
    %71 = arith.andi %66, %70 : vector<1x512xi1>
    %c1_i32 = arith.constant 1 : i32
    %72 = vector.broadcast %c1_i32 : i32 to vector<1x512xi32>
    %73 = arith.addi %1, %72 : vector<1x512xi32>
    %c0_i32_33 = arith.constant 0 : i32
    %74 = vector.broadcast %c0_i32_33 : i32 to vector<1x512xi32>
    %75 = arith.cmpi sge, %73, %74 : vector<1x512xi32>
    %76 = arith.andi %71, %75 : vector<1x512xi1>
    %c1_i32_34 = arith.constant 1 : i32
    %77 = vector.broadcast %c1_i32_34 : i32 to vector<1x512xi32>
    %78 = arith.addi %1, %77 : vector<1x512xi32>
    %c16_i32_35 = arith.constant 16 : i32
    %79 = vector.broadcast %c16_i32_35 : i32 to vector<1x512xi32>
    %80 = arith.cmpi slt, %78, %79 : vector<1x512xi32>
    %81 = arith.andi %76, %80 : vector<1x512xi1>
    %c15_i32 = arith.constant 15 : i32
    %82 = tpu.dynamic_rotate %3 by %c15_i32 dim 1 : vector<4x512xf32>, i32 -> vector<4x512xf32>
    %83 = arith.extui %81 : vector<1x512xi1> to vector<1x512xi32>
    %84 = arith.sitofp %83 : vector<1x512xi32> to vector<1x512xf32>
    %85 = vector.broadcast %84 : vector<1x512xf32> to vector<4x512xf32>
    %86 = arith.mulf %82, %85 : vector<4x512xf32>
    %c2 = arith.constant 2 : index
    %c0_36 = arith.constant 0 : index
    %c0_37 = arith.constant 0 : index
    %87 = vector.load %arg3[%c2, %c0_36, %c0_37] : memref<9x8x4xf32, #tpu.memory_space<vmem>>, vector<1x8x4xf32>
    %88 = vector.shape_cast %87 : vector<1x8x4xf32> to vector<8x4xf32>
    %cst_38 = arith.constant dense<0.000000e+00> : vector<8x512xf32>
    %89 = tpu.matmul %88, %86, %cst_38 {dimension_numbers = #tpu.dot_dimension_numbers<[1], [0], [0], [1], [0, 0, 1, 1], [], []>} : vector<8x4xf32>, vector<4x512xf32>, vector<8x512xf32> -> vector<8x512xf32>
    %90 = arith.addf %62, %89 : vector<8x512xf32>
    %c0_i32_39 = arith.constant 0 : i32
    %91 = vector.broadcast %c0_i32_39 : i32 to vector<1x512xi32>
    %92 = arith.addi %0, %91 : vector<1x512xi32>
    %c0_i32_40 = arith.constant 0 : i32
    %93 = vector.broadcast %c0_i32_40 : i32 to vector<1x512xi32>
    %94 = arith.cmpi sge, %92, %93 : vector<1x512xi32>
    %c0_i32_41 = arith.constant 0 : i32
    %95 = vector.broadcast %c0_i32_41 : i32 to vector<1x512xi32>
    %96 = arith.addi %0, %95 : vector<1x512xi32>
    %c16_i32_42 = arith.constant 16 : i32
    %97 = vector.broadcast %c16_i32_42 : i32 to vector<1x512xi32>
    %98 = arith.cmpi slt, %96, %97 : vector<1x512xi32>
    %99 = arith.andi %94, %98 : vector<1x512xi1>
    %c-1_i32_43 = arith.constant -1 : i32
    %100 = vector.broadcast %c-1_i32_43 : i32 to vector<1x512xi32>
    %101 = arith.addi %1, %100 : vector<1x512xi32>
    %c0_i32_44 = arith.constant 0 : i32
    %102 = vector.broadcast %c0_i32_44 : i32 to vector<1x512xi32>
    %103 = arith.cmpi sge, %101, %102 : vector<1x512xi32>
    %104 = arith.andi %99, %103 : vector<1x512xi1>
    %c-1_i32_45 = arith.constant -1 : i32
    %105 = vector.broadcast %c-1_i32_45 : i32 to vector<1x512xi32>
    %106 = arith.addi %1, %105 : vector<1x512xi32>
    %c16_i32_46 = arith.constant 16 : i32
    %107 = vector.broadcast %c16_i32_46 : i32 to vector<1x512xi32>
    %108 = arith.cmpi slt, %106, %107 : vector<1x512xi32>
    %109 = arith.andi %104, %108 : vector<1x512xi1>
    %c1_i32_47 = arith.constant 1 : i32
    %110 = tpu.dynamic_rotate %3 by %c1_i32_47 dim 1 : vector<4x512xf32>, i32 -> vector<4x512xf32>
    %111 = arith.extui %109 : vector<1x512xi1> to vector<1x512xi32>
    %112 = arith.sitofp %111 : vector<1x512xi32> to vector<1x512xf32>
    %113 = vector.broadcast %112 : vector<1x512xf32> to vector<4x512xf32>
    %114 = arith.mulf %110, %113 : vector<4x512xf32>
    %c3 = arith.constant 3 : index
    %c0_48 = arith.constant 0 : index
    %c0_49 = arith.constant 0 : index
    %115 = vector.load %arg3[%c3, %c0_48, %c0_49] : memref<9x8x4xf32, #tpu.memory_space<vmem>>, vector<1x8x4xf32>
    %116 = vector.shape_cast %115 : vector<1x8x4xf32> to vector<8x4xf32>
    %cst_50 = arith.constant dense<0.000000e+00> : vector<8x512xf32>
    %117 = tpu.matmul %116, %114, %cst_50 {dimension_numbers = #tpu.dot_dimension_numbers<[1], [0], [0], [1], [0, 0, 1, 1], [], []>} : vector<8x4xf32>, vector<4x512xf32>, vector<8x512xf32> -> vector<8x512xf32>
    %118 = arith.addf %90, %117 : vector<8x512xf32>
    %c0_i32_51 = arith.constant 0 : i32
    %119 = vector.broadcast %c0_i32_51 : i32 to vector<1x512xi32>
    %120 = arith.addi %0, %119 : vector<1x512xi32>
    %c0_i32_52 = arith.constant 0 : i32
    %121 = vector.broadcast %c0_i32_52 : i32 to vector<1x512xi32>
    %122 = arith.cmpi sge, %120, %121 : vector<1x512xi32>
    %c0_i32_53 = arith.constant 0 : i32
    %123 = vector.broadcast %c0_i32_53 : i32 to vector<1x512xi32>
    %124 = arith.addi %0, %123 : vector<1x512xi32>
    %c16_i32_54 = arith.constant 16 : i32
    %125 = vector.broadcast %c16_i32_54 : i32 to vector<1x512xi32>
    %126 = arith.cmpi slt, %124, %125 : vector<1x512xi32>
    %127 = arith.andi %122, %126 : vector<1x512xi1>
    %c1_i32_55 = arith.constant 1 : i32
    %128 = vector.broadcast %c1_i32_55 : i32 to vector<1x512xi32>
    %129 = arith.addi %1, %128 : vector<1x512xi32>
    %c0_i32_56 = arith.constant 0 : i32
    %130 = vector.broadcast %c0_i32_56 : i32 to vector<1x512xi32>
    %131 = arith.cmpi sge, %129, %130 : vector<1x512xi32>
    %132 = arith.andi %127, %131 : vector<1x512xi1>
    %c1_i32_57 = arith.constant 1 : i32
    %133 = vector.broadcast %c1_i32_57 : i32 to vector<1x512xi32>
    %134 = arith.addi %1, %133 : vector<1x512xi32>
    %c16_i32_58 = arith.constant 16 : i32
    %135 = vector.broadcast %c16_i32_58 : i32 to vector<1x512xi32>
    %136 = arith.cmpi slt, %134, %135 : vector<1x512xi32>
    %137 = arith.andi %132, %136 : vector<1x512xi1>
    %c511_i32 = arith.constant 511 : i32
    %138 = tpu.dynamic_rotate %3 by %c511_i32 dim 1 : vector<4x512xf32>, i32 -> vector<4x512xf32>
    %139 = arith.extui %137 : vector<1x512xi1> to vector<1x512xi32>
    %140 = arith.sitofp %139 : vector<1x512xi32> to vector<1x512xf32>
    %141 = vector.broadcast %140 : vector<1x512xf32> to vector<4x512xf32>
    %142 = arith.mulf %138, %141 : vector<4x512xf32>
    %c5 = arith.constant 5 : index
    %c0_59 = arith.constant 0 : index
    %c0_60 = arith.constant 0 : index
    %143 = vector.load %arg3[%c5, %c0_59, %c0_60] : memref<9x8x4xf32, #tpu.memory_space<vmem>>, vector<1x8x4xf32>
    %144 = vector.shape_cast %143 : vector<1x8x4xf32> to vector<8x4xf32>
    %cst_61 = arith.constant dense<0.000000e+00> : vector<8x512xf32>
    %145 = tpu.matmul %144, %142, %cst_61 {dimension_numbers = #tpu.dot_dimension_numbers<[1], [0], [0], [1], [0, 0, 1, 1], [], []>} : vector<8x4xf32>, vector<4x512xf32>, vector<8x512xf32> -> vector<8x512xf32>
    %146 = arith.addf %118, %145 : vector<8x512xf32>
    %c1_i32_62 = arith.constant 1 : i32
    %147 = vector.broadcast %c1_i32_62 : i32 to vector<1x512xi32>
    %148 = arith.addi %0, %147 : vector<1x512xi32>
    %c0_i32_63 = arith.constant 0 : i32
    %149 = vector.broadcast %c0_i32_63 : i32 to vector<1x512xi32>
    %150 = arith.cmpi sge, %148, %149 : vector<1x512xi32>
    %c1_i32_64 = arith.constant 1 : i32
    %151 = vector.broadcast %c1_i32_64 : i32 to vector<1x512xi32>
    %152 = arith.addi %0, %151 : vector<1x512xi32>
    %c16_i32_65 = arith.constant 16 : i32
    %153 = vector.broadcast %c16_i32_65 : i32 to vector<1x512xi32>
    %154 = arith.cmpi slt, %152, %153 : vector<1x512xi32>
    %155 = arith.andi %150, %154 : vector<1x512xi1>
    %c-1_i32_66 = arith.constant -1 : i32
    %156 = vector.broadcast %c-1_i32_66 : i32 to vector<1x512xi32>
    %157 = arith.addi %1, %156 : vector<1x512xi32>
    %c0_i32_67 = arith.constant 0 : i32
    %158 = vector.broadcast %c0_i32_67 : i32 to vector<1x512xi32>
    %159 = arith.cmpi sge, %157, %158 : vector<1x512xi32>
    %160 = arith.andi %155, %159 : vector<1x512xi1>
    %c-1_i32_68 = arith.constant -1 : i32
    %161 = vector.broadcast %c-1_i32_68 : i32 to vector<1x512xi32>
    %162 = arith.addi %1, %161 : vector<1x512xi32>
    %c16_i32_69 = arith.constant 16 : i32
    %163 = vector.broadcast %c16_i32_69 : i32 to vector<1x512xi32>
    %164 = arith.cmpi slt, %162, %163 : vector<1x512xi32>
    %165 = arith.andi %160, %164 : vector<1x512xi1>
    %c497_i32 = arith.constant 497 : i32
    %166 = tpu.dynamic_rotate %3 by %c497_i32 dim 1 : vector<4x512xf32>, i32 -> vector<4x512xf32>
    %167 = arith.extui %165 : vector<1x512xi1> to vector<1x512xi32>
    %168 = arith.sitofp %167 : vector<1x512xi32> to vector<1x512xf32>
    %169 = vector.broadcast %168 : vector<1x512xf32> to vector<4x512xf32>
    %170 = arith.mulf %166, %169 : vector<4x512xf32>
    %c6 = arith.constant 6 : index
    %c0_70 = arith.constant 0 : index
    %c0_71 = arith.constant 0 : index
    %171 = vector.load %arg3[%c6, %c0_70, %c0_71] : memref<9x8x4xf32, #tpu.memory_space<vmem>>, vector<1x8x4xf32>
    %172 = vector.shape_cast %171 : vector<1x8x4xf32> to vector<8x4xf32>
    %cst_72 = arith.constant dense<0.000000e+00> : vector<8x512xf32>
    %173 = tpu.matmul %172, %170, %cst_72 {dimension_numbers = #tpu.dot_dimension_numbers<[1], [0], [0], [1], [0, 0, 1, 1], [], []>} : vector<8x4xf32>, vector<4x512xf32>, vector<8x512xf32> -> vector<8x512xf32>
    %174 = arith.addf %146, %173 : vector<8x512xf32>
    %c1_i32_73 = arith.constant 1 : i32
    %175 = vector.broadcast %c1_i32_73 : i32 to vector<1x512xi32>
    %176 = arith.addi %0, %175 : vector<1x512xi32>
    %c0_i32_74 = arith.constant 0 : i32
    %177 = vector.broadcast %c0_i32_74 : i32 to vector<1x512xi32>
    %178 = arith.cmpi sge, %176, %177 : vector<1x512xi32>
    %c1_i32_75 = arith.constant 1 : i32
    %179 = vector.broadcast %c1_i32_75 : i32 to vector<1x512xi32>
    %180 = arith.addi %0, %179 : vector<1x512xi32>
    %c16_i32_76 = arith.constant 16 : i32
    %181 = vector.broadcast %c16_i32_76 : i32 to vector<1x512xi32>
    %182 = arith.cmpi slt, %180, %181 : vector<1x512xi32>
    %183 = arith.andi %178, %182 : vector<1x512xi1>
    %c0_i32_77 = arith.constant 0 : i32
    %184 = vector.broadcast %c0_i32_77 : i32 to vector<1x512xi32>
    %185 = arith.addi %1, %184 : vector<1x512xi32>
    %c0_i32_78 = arith.constant 0 : i32
    %186 = vector.broadcast %c0_i32_78 : i32 to vector<1x512xi32>
    %187 = arith.cmpi sge, %185, %186 : vector<1x512xi32>
    %188 = arith.andi %183, %187 : vector<1x512xi1>
    %c0_i32_79 = arith.constant 0 : i32
    %189 = vector.broadcast %c0_i32_79 : i32 to vector<1x512xi32>
    %190 = arith.addi %1, %189 : vector<1x512xi32>
    %c16_i32_80 = arith.constant 16 : i32
    %191 = vector.broadcast %c16_i32_80 : i32 to vector<1x512xi32>
    %192 = arith.cmpi slt, %190, %191 : vector<1x512xi32>
    %193 = arith.andi %188, %192 : vector<1x512xi1>
    %c496_i32 = arith.constant 496 : i32
    %194 = tpu.dynamic_rotate %3 by %c496_i32 dim 1 : vector<4x512xf32>, i32 -> vector<4x512xf32>
    %195 = arith.extui %193 : vector<1x512xi1> to vector<1x512xi32>
    %196 = arith.sitofp %195 : vector<1x512xi32> to vector<1x512xf32>
    %197 = vector.broadcast %196 : vector<1x512xf32> to vector<4x512xf32>
    %198 = arith.mulf %194, %197 : vector<4x512xf32>
    %c7 = arith.constant 7 : index
    %c0_81 = arith.constant 0 : index
    %c0_82 = arith.constant 0 : index
    %199 = vector.load %arg3[%c7, %c0_81, %c0_82] : memref<9x8x4xf32, #tpu.memory_space<vmem>>, vector<1x8x4xf32>
    %200 = vector.shape_cast %199 : vector<1x8x4xf32> to vector<8x4xf32>
    %cst_83 = arith.constant dense<0.000000e+00> : vector<8x512xf32>
    %201 = tpu.matmul %200, %198, %cst_83 {dimension_numbers = #tpu.dot_dimension_numbers<[1], [0], [0], [1], [0, 0, 1, 1], [], []>} : vector<8x4xf32>, vector<4x512xf32>, vector<8x512xf32> -> vector<8x512xf32>
    %202 = arith.addf %174, %201 : vector<8x512xf32>
    %c1_i32_84 = arith.constant 1 : i32
    %203 = vector.broadcast %c1_i32_84 : i32 to vector<1x512xi32>
    %204 = arith.addi %0, %203 : vector<1x512xi32>
    %c0_i32_85 = arith.constant 0 : i32
    %205 = vector.broadcast %c0_i32_85 : i32 to vector<1x512xi32>
    %206 = arith.cmpi sge, %204, %205 : vector<1x512xi32>
    %c1_i32_86 = arith.constant 1 : i32
    %207 = vector.broadcast %c1_i32_86 : i32 to vector<1x512xi32>
    %208 = arith.addi %0, %207 : vector<1x512xi32>
    %c16_i32_87 = arith.constant 16 : i32
    %209 = vector.broadcast %c16_i32_87 : i32 to vector<1x512xi32>
    %210 = arith.cmpi slt, %208, %209 : vector<1x512xi32>
    %211 = arith.andi %206, %210 : vector<1x512xi1>
    %c1_i32_88 = arith.constant 1 : i32
    %212 = vector.broadcast %c1_i32_88 : i32 to vector<1x512xi32>
    %213 = arith.addi %1, %212 : vector<1x512xi32>
    %c0_i32_89 = arith.constant 0 : i32
    %214 = vector.broadcast %c0_i32_89 : i32 to vector<1x512xi32>
    %215 = arith.cmpi sge, %213, %214 : vector<1x512xi32>
    %216 = arith.andi %211, %215 : vector<1x512xi1>
    %c1_i32_90 = arith.constant 1 : i32
    %217 = vector.broadcast %c1_i32_90 : i32 to vector<1x512xi32>
    %218 = arith.addi %1, %217 : vector<1x512xi32>
    %c16_i32_91 = arith.constant 16 : i32
    %219 = vector.broadcast %c16_i32_91 : i32 to vector<1x512xi32>
    %220 = arith.cmpi slt, %218, %219 : vector<1x512xi32>
    %221 = arith.andi %216, %220 : vector<1x512xi1>
    %c495_i32 = arith.constant 495 : i32
    %222 = tpu.dynamic_rotate %3 by %c495_i32 dim 1 : vector<4x512xf32>, i32 -> vector<4x512xf32>
    %223 = arith.extui %221 : vector<1x512xi1> to vector<1x512xi32>
    %224 = arith.sitofp %223 : vector<1x512xi32> to vector<1x512xf32>
    %225 = vector.broadcast %224 : vector<1x512xf32> to vector<4x512xf32>
    %226 = arith.mulf %222, %225 : vector<4x512xf32>
    %c8 = arith.constant 8 : index
    %c0_92 = arith.constant 0 : index
    %c0_93 = arith.constant 0 : index
    %227 = vector.load %arg3[%c8, %c0_92, %c0_93] : memref<9x8x4xf32, #tpu.memory_space<vmem>>, vector<1x8x4xf32>
    %228 = vector.shape_cast %227 : vector<1x8x4xf32> to vector<8x4xf32>
    %cst_94 = arith.constant dense<0.000000e+00> : vector<8x512xf32>
    %229 = tpu.matmul %228, %226, %cst_94 {dimension_numbers = #tpu.dot_dimension_numbers<[1], [0], [0], [1], [0, 0, 1, 1], [], []>} : vector<8x4xf32>, vector<4x512xf32>, vector<8x512xf32> -> vector<8x512xf32>
    %230 = arith.addf %202, %229 : vector<8x512xf32>
    %cst_95 = arith.constant 0.000000e+00 : f32
    %231 = vector.broadcast %cst_95 : f32 to vector<8x512xf32>
    %232 = arith.cmpf ogt, %230, %231 : vector<8x512xf32>
    %cst_96 = arith.constant 2.000000e-01 : f32
    %233 = vector.broadcast %cst_96 : f32 to vector<8x512xf32>
    %234 = arith.mulf %233, %230 : vector<8x512xf32>
    %235 = arith.select %232, %230, %234 : vector<8x512xi1>, vector<8x512xf32>
    %c4_97 = arith.constant 4 : index
    %c0_98 = arith.constant 0 : index
    %c0_99 = arith.constant 0 : index
    %236 = vector.load %arg4[%c4_97, %c0_98, %c0_99] : memref<9x8x8xf32, #tpu.memory_space<vmem>>, vector<1x8x8xf32>
    %237 = vector.shape_cast %236 : vector<1x8x8xf32> to vector<8x8xf32>
    %cst_100 = arith.constant dense<0.000000e+00> : vector<8x512xf32>
    %238 = tpu.matmul %237, %235, %cst_100 {dimension_numbers = #tpu.dot_dimension_numbers<[1], [0], [0], [1], [0, 0, 1, 1], [], []>} : vector<8x8xf32>, vector<8x512xf32>, vector<8x512xf32> -> vector<8x512xf32>
    %c-1_i32_101 = arith.constant -1 : i32
    %239 = vector.broadcast %c-1_i32_101 : i32 to vector<1x512xi32>
    %240 = arith.addi %0, %239 : vector<1x512xi32>
    %c0_i32_102 = arith.constant 0 : i32
    %241 = vector.broadcast %c0_i32_102 : i32 to vector<1x512xi32>
    %242 = arith.cmpi sge, %240, %241 : vector<1x512xi32>
    %c-1_i32_103 = arith.constant -1 : i32
    %243 = vector.broadcast %c-1_i32_103 : i32 to vector<1x512xi32>
    %244 = arith.addi %0, %243 : vector<1x512xi32>
    %c16_i32_104 = arith.constant 16 : i32
    %245 = vector.broadcast %c16_i32_104 : i32 to vector<1x512xi32>
    %246 = arith.cmpi slt, %244, %245 : vector<1x512xi32>
    %247 = arith.andi %242, %246 : vector<1x512xi1>
    %c-1_i32_105 = arith.constant -1 : i32
    %248 = vector.broadcast %c-1_i32_105 : i32 to vector<1x512xi32>
    %249 = arith.addi %1, %248 : vector<1x512xi32>
    %c0_i32_106 = arith.constant 0 : i32
    %250 = vector.broadcast %c0_i32_106 : i32 to vector<1x512xi32>
    %251 = arith.cmpi sge, %249, %250 : vector<1x512xi32>
    %252 = arith.andi %247, %251 : vector<1x512xi1>
    %c-1_i32_107 = arith.constant -1 : i32
    %253 = vector.broadcast %c-1_i32_107 : i32 to vector<1x512xi32>
    %254 = arith.addi %1, %253 : vector<1x512xi32>
    %c16_i32_108 = arith.constant 16 : i32
    %255 = vector.broadcast %c16_i32_108 : i32 to vector<1x512xi32>
    %256 = arith.cmpi slt, %254, %255 : vector<1x512xi32>
    %257 = arith.andi %252, %256 : vector<1x512xi1>
    %c17_i32_109 = arith.constant 17 : i32
    %258 = tpu.dynamic_rotate %235 by %c17_i32_109 dim 1 : vector<8x512xf32>, i32 -> vector<8x512xf32>
    %259 = arith.extui %257 : vector<1x512xi1> to vector<1x512xi32>
    %260 = arith.sitofp %259 : vector<1x512xi32> to vector<1x512xf32>
    %261 = vector.broadcast %260 : vector<1x512xf32> to vector<8x512xf32>
    %262 = arith.mulf %258, %261 : vector<8x512xf32>
    %c0_110 = arith.constant 0 : index
    %c0_111 = arith.constant 0 : index
    %c0_112 = arith.constant 0 : index
    %263 = vector.load %arg4[%c0_110, %c0_111, %c0_112] : memref<9x8x8xf32, #tpu.memory_space<vmem>>, vector<1x8x8xf32>
    %264 = vector.shape_cast %263 : vector<1x8x8xf32> to vector<8x8xf32>
    %cst_113 = arith.constant dense<0.000000e+00> : vector<8x512xf32>
    %265 = tpu.matmul %264, %262, %cst_113 {dimension_numbers = #tpu.dot_dimension_numbers<[1], [0], [0], [1], [0, 0, 1, 1], [], []>} : vector<8x8xf32>, vector<8x512xf32>, vector<8x512xf32> -> vector<8x512xf32>
    %266 = arith.addf %238, %265 : vector<8x512xf32>
    %c-1_i32_114 = arith.constant -1 : i32
    %267 = vector.broadcast %c-1_i32_114 : i32 to vector<1x512xi32>
    %268 = arith.addi %0, %267 : vector<1x512xi32>
    %c0_i32_115 = arith.constant 0 : i32
    %269 = vector.broadcast %c0_i32_115 : i32 to vector<1x512xi32>
    %270 = arith.cmpi sge, %268, %269 : vector<1x512xi32>
    %c-1_i32_116 = arith.constant -1 : i32
    %271 = vector.broadcast %c-1_i32_116 : i32 to vector<1x512xi32>
    %272 = arith.addi %0, %271 : vector<1x512xi32>
    %c16_i32_117 = arith.constant 16 : i32
    %273 = vector.broadcast %c16_i32_117 : i32 to vector<1x512xi32>
    %274 = arith.cmpi slt, %272, %273 : vector<1x512xi32>
    %275 = arith.andi %270, %274 : vector<1x512xi1>
    %c0_i32_118 = arith.constant 0 : i32
    %276 = vector.broadcast %c0_i32_118 : i32 to vector<1x512xi32>
    %277 = arith.addi %1, %276 : vector<1x512xi32>
    %c0_i32_119 = arith.constant 0 : i32
    %278 = vector.broadcast %c0_i32_119 : i32 to vector<1x512xi32>
    %279 = arith.cmpi sge, %277, %278 : vector<1x512xi32>
    %280 = arith.andi %275, %279 : vector<1x512xi1>
    %c0_i32_120 = arith.constant 0 : i32
    %281 = vector.broadcast %c0_i32_120 : i32 to vector<1x512xi32>
    %282 = arith.addi %1, %281 : vector<1x512xi32>
    %c16_i32_121 = arith.constant 16 : i32
    %283 = vector.broadcast %c16_i32_121 : i32 to vector<1x512xi32>
    %284 = arith.cmpi slt, %282, %283 : vector<1x512xi32>
    %285 = arith.andi %280, %284 : vector<1x512xi1>
    %c16_i32_122 = arith.constant 16 : i32
    %286 = tpu.dynamic_rotate %235 by %c16_i32_122 dim 1 : vector<8x512xf32>, i32 -> vector<8x512xf32>
    %287 = arith.extui %285 : vector<1x512xi1> to vector<1x512xi32>
    %288 = arith.sitofp %287 : vector<1x512xi32> to vector<1x512xf32>
    %289 = vector.broadcast %288 : vector<1x512xf32> to vector<8x512xf32>
    %290 = arith.mulf %286, %289 : vector<8x512xf32>
    %c1_123 = arith.constant 1 : index
    %c0_124 = arith.constant 0 : index
    %c0_125 = arith.constant 0 : index
    %291 = vector.load %arg4[%c1_123, %c0_124, %c0_125] : memref<9x8x8xf32, #tpu.memory_space<vmem>>, vector<1x8x8xf32>
    %292 = vector.shape_cast %291 : vector<1x8x8xf32> to vector<8x8xf32>
    %cst_126 = arith.constant dense<0.000000e+00> : vector<8x512xf32>
    %293 = tpu.matmul %292, %290, %cst_126 {dimension_numbers = #tpu.dot_dimension_numbers<[1], [0], [0], [1], [0, 0, 1, 1], [], []>} : vector<8x8xf32>, vector<8x512xf32>, vector<8x512xf32> -> vector<8x512xf32>
    %294 = arith.addf %266, %293 : vector<8x512xf32>
    %c-1_i32_127 = arith.constant -1 : i32
    %295 = vector.broadcast %c-1_i32_127 : i32 to vector<1x512xi32>
    %296 = arith.addi %0, %295 : vector<1x512xi32>
    %c0_i32_128 = arith.constant 0 : i32
    %297 = vector.broadcast %c0_i32_128 : i32 to vector<1x512xi32>
    %298 = arith.cmpi sge, %296, %297 : vector<1x512xi32>
    %c-1_i32_129 = arith.constant -1 : i32
    %299 = vector.broadcast %c-1_i32_129 : i32 to vector<1x512xi32>
    %300 = arith.addi %0, %299 : vector<1x512xi32>
    %c16_i32_130 = arith.constant 16 : i32
    %301 = vector.broadcast %c16_i32_130 : i32 to vector<1x512xi32>
    %302 = arith.cmpi slt, %300, %301 : vector<1x512xi32>
    %303 = arith.andi %298, %302 : vector<1x512xi1>
    %c1_i32_131 = arith.constant 1 : i32
    %304 = vector.broadcast %c1_i32_131 : i32 to vector<1x512xi32>
    %305 = arith.addi %1, %304 : vector<1x512xi32>
    %c0_i32_132 = arith.constant 0 : i32
    %306 = vector.broadcast %c0_i32_132 : i32 to vector<1x512xi32>
    %307 = arith.cmpi sge, %305, %306 : vector<1x512xi32>
    %308 = arith.andi %303, %307 : vector<1x512xi1>
    %c1_i32_133 = arith.constant 1 : i32
    %309 = vector.broadcast %c1_i32_133 : i32 to vector<1x512xi32>
    %310 = arith.addi %1, %309 : vector<1x512xi32>
    %c16_i32_134 = arith.constant 16 : i32
    %311 = vector.broadcast %c16_i32_134 : i32 to vector<1x512xi32>
    %312 = arith.cmpi slt, %310, %311 : vector<1x512xi32>
    %313 = arith.andi %308, %312 : vector<1x512xi1>
    %c15_i32_135 = arith.constant 15 : i32
    %314 = tpu.dynamic_rotate %235 by %c15_i32_135 dim 1 : vector<8x512xf32>, i32 -> vector<8x512xf32>
    %315 = arith.extui %313 : vector<1x512xi1> to vector<1x512xi32>
    %316 = arith.sitofp %315 : vector<1x512xi32> to vector<1x512xf32>
    %317 = vector.broadcast %316 : vector<1x512xf32> to vector<8x512xf32>
    %318 = arith.mulf %314, %317 : vector<8x512xf32>
    %c2_136 = arith.constant 2 : index
    %c0_137 = arith.constant 0 : index
    %c0_138 = arith.constant 0 : index
    %319 = vector.load %arg4[%c2_136, %c0_137, %c0_138] : memref<9x8x8xf32, #tpu.memory_space<vmem>>, vector<1x8x8xf32>
    %320 = vector.shape_cast %319 : vector<1x8x8xf32> to vector<8x8xf32>
    %cst_139 = arith.constant dense<0.000000e+00> : vector<8x512xf32>
    %321 = tpu.matmul %320, %318, %cst_139 {dimension_numbers = #tpu.dot_dimension_numbers<[1], [0], [0], [1], [0, 0, 1, 1], [], []>} : vector<8x8xf32>, vector<8x512xf32>, vector<8x512xf32> -> vector<8x512xf32>
    %322 = arith.addf %294, %321 : vector<8x512xf32>
    %c0_i32_140 = arith.constant 0 : i32
    %323 = vector.broadcast %c0_i32_140 : i32 to vector<1x512xi32>
    %324 = arith.addi %0, %323 : vector<1x512xi32>
    %c0_i32_141 = arith.constant 0 : i32
    %325 = vector.broadcast %c0_i32_141 : i32 to vector<1x512xi32>
    %326 = arith.cmpi sge, %324, %325 : vector<1x512xi32>
    %c0_i32_142 = arith.constant 0 : i32
    %327 = vector.broadcast %c0_i32_142 : i32 to vector<1x512xi32>
    %328 = arith.addi %0, %327 : vector<1x512xi32>
    %c16_i32_143 = arith.constant 16 : i32
    %329 = vector.broadcast %c16_i32_143 : i32 to vector<1x512xi32>
    %330 = arith.cmpi slt, %328, %329 : vector<1x512xi32>
    %331 = arith.andi %326, %330 : vector<1x512xi1>
    %c-1_i32_144 = arith.constant -1 : i32
    %332 = vector.broadcast %c-1_i32_144 : i32 to vector<1x512xi32>
    %333 = arith.addi %1, %332 : vector<1x512xi32>
    %c0_i32_145 = arith.constant 0 : i32
    %334 = vector.broadcast %c0_i32_145 : i32 to vector<1x512xi32>
    %335 = arith.cmpi sge, %333, %334 : vector<1x512xi32>
    %336 = arith.andi %331, %335 : vector<1x512xi1>
    %c-1_i32_146 = arith.constant -1 : i32
    %337 = vector.broadcast %c-1_i32_146 : i32 to vector<1x512xi32>
    %338 = arith.addi %1, %337 : vector<1x512xi32>
    %c16_i32_147 = arith.constant 16 : i32
    %339 = vector.broadcast %c16_i32_147 : i32 to vector<1x512xi32>
    %340 = arith.cmpi slt, %338, %339 : vector<1x512xi32>
    %341 = arith.andi %336, %340 : vector<1x512xi1>
    %c1_i32_148 = arith.constant 1 : i32
    %342 = tpu.dynamic_rotate %235 by %c1_i32_148 dim 1 : vector<8x512xf32>, i32 -> vector<8x512xf32>
    %343 = arith.extui %341 : vector<1x512xi1> to vector<1x512xi32>
    %344 = arith.sitofp %343 : vector<1x512xi32> to vector<1x512xf32>
    %345 = vector.broadcast %344 : vector<1x512xf32> to vector<8x512xf32>
    %346 = arith.mulf %342, %345 : vector<8x512xf32>
    %c3_149 = arith.constant 3 : index
    %c0_150 = arith.constant 0 : index
    %c0_151 = arith.constant 0 : index
    %347 = vector.load %arg4[%c3_149, %c0_150, %c0_151] : memref<9x8x8xf32, #tpu.memory_space<vmem>>, vector<1x8x8xf32>
    %348 = vector.shape_cast %347 : vector<1x8x8xf32> to vector<8x8xf32>
    %cst_152 = arith.constant dense<0.000000e+00> : vector<8x512xf32>
    %349 = tpu.matmul %348, %346, %cst_152 {dimension_numbers = #tpu.dot_dimension_numbers<[1], [0], [0], [1], [0, 0, 1, 1], [], []>} : vector<8x8xf32>, vector<8x512xf32>, vector<8x512xf32> -> vector<8x512xf32>
    %350 = arith.addf %322, %349 : vector<8x512xf32>
    %c0_i32_153 = arith.constant 0 : i32
    %351 = vector.broadcast %c0_i32_153 : i32 to vector<1x512xi32>
    %352 = arith.addi %0, %351 : vector<1x512xi32>
    %c0_i32_154 = arith.constant 0 : i32
    %353 = vector.broadcast %c0_i32_154 : i32 to vector<1x512xi32>
    %354 = arith.cmpi sge, %352, %353 : vector<1x512xi32>
    %c0_i32_155 = arith.constant 0 : i32
    %355 = vector.broadcast %c0_i32_155 : i32 to vector<1x512xi32>
    %356 = arith.addi %0, %355 : vector<1x512xi32>
    %c16_i32_156 = arith.constant 16 : i32
    %357 = vector.broadcast %c16_i32_156 : i32 to vector<1x512xi32>
    %358 = arith.cmpi slt, %356, %357 : vector<1x512xi32>
    %359 = arith.andi %354, %358 : vector<1x512xi1>
    %c1_i32_157 = arith.constant 1 : i32
    %360 = vector.broadcast %c1_i32_157 : i32 to vector<1x512xi32>
    %361 = arith.addi %1, %360 : vector<1x512xi32>
    %c0_i32_158 = arith.constant 0 : i32
    %362 = vector.broadcast %c0_i32_158 : i32 to vector<1x512xi32>
    %363 = arith.cmpi sge, %361, %362 : vector<1x512xi32>
    %364 = arith.andi %359, %363 : vector<1x512xi1>
    %c1_i32_159 = arith.constant 1 : i32
    %365 = vector.broadcast %c1_i32_159 : i32 to vector<1x512xi32>
    %366 = arith.addi %1, %365 : vector<1x512xi32>
    %c16_i32_160 = arith.constant 16 : i32
    %367 = vector.broadcast %c16_i32_160 : i32 to vector<1x512xi32>
    %368 = arith.cmpi slt, %366, %367 : vector<1x512xi32>
    %369 = arith.andi %364, %368 : vector<1x512xi1>
    %c511_i32_161 = arith.constant 511 : i32
    %370 = tpu.dynamic_rotate %235 by %c511_i32_161 dim 1 : vector<8x512xf32>, i32 -> vector<8x512xf32>
    %371 = arith.extui %369 : vector<1x512xi1> to vector<1x512xi32>
    %372 = arith.sitofp %371 : vector<1x512xi32> to vector<1x512xf32>
    %373 = vector.broadcast %372 : vector<1x512xf32> to vector<8x512xf32>
    %374 = arith.mulf %370, %373 : vector<8x512xf32>
    %c5_162 = arith.constant 5 : index
    %c0_163 = arith.constant 0 : index
    %c0_164 = arith.constant 0 : index
    %375 = vector.load %arg4[%c5_162, %c0_163, %c0_164] : memref<9x8x8xf32, #tpu.memory_space<vmem>>, vector<1x8x8xf32>
    %376 = vector.shape_cast %375 : vector<1x8x8xf32> to vector<8x8xf32>
    %cst_165 = arith.constant dense<0.000000e+00> : vector<8x512xf32>
    %377 = tpu.matmul %376, %374, %cst_165 {dimension_numbers = #tpu.dot_dimension_numbers<[1], [0], [0], [1], [0, 0, 1, 1], [], []>} : vector<8x8xf32>, vector<8x512xf32>, vector<8x512xf32> -> vector<8x512xf32>
    %378 = arith.addf %350, %377 : vector<8x512xf32>
    %c1_i32_166 = arith.constant 1 : i32
    %379 = vector.broadcast %c1_i32_166 : i32 to vector<1x512xi32>
    %380 = arith.addi %0, %379 : vector<1x512xi32>
    %c0_i32_167 = arith.constant 0 : i32
    %381 = vector.broadcast %c0_i32_167 : i32 to vector<1x512xi32>
    %382 = arith.cmpi sge, %380, %381 : vector<1x512xi32>
    %c1_i32_168 = arith.constant 1 : i32
    %383 = vector.broadcast %c1_i32_168 : i32 to vector<1x512xi32>
    %384 = arith.addi %0, %383 : vector<1x512xi32>
    %c16_i32_169 = arith.constant 16 : i32
    %385 = vector.broadcast %c16_i32_169 : i32 to vector<1x512xi32>
    %386 = arith.cmpi slt, %384, %385 : vector<1x512xi32>
    %387 = arith.andi %382, %386 : vector<1x512xi1>
    %c-1_i32_170 = arith.constant -1 : i32
    %388 = vector.broadcast %c-1_i32_170 : i32 to vector<1x512xi32>
    %389 = arith.addi %1, %388 : vector<1x512xi32>
    %c0_i32_171 = arith.constant 0 : i32
    %390 = vector.broadcast %c0_i32_171 : i32 to vector<1x512xi32>
    %391 = arith.cmpi sge, %389, %390 : vector<1x512xi32>
    %392 = arith.andi %387, %391 : vector<1x512xi1>
    %c-1_i32_172 = arith.constant -1 : i32
    %393 = vector.broadcast %c-1_i32_172 : i32 to vector<1x512xi32>
    %394 = arith.addi %1, %393 : vector<1x512xi32>
    %c16_i32_173 = arith.constant 16 : i32
    %395 = vector.broadcast %c16_i32_173 : i32 to vector<1x512xi32>
    %396 = arith.cmpi slt, %394, %395 : vector<1x512xi32>
    %397 = arith.andi %392, %396 : vector<1x512xi1>
    %c497_i32_174 = arith.constant 497 : i32
    %398 = tpu.dynamic_rotate %235 by %c497_i32_174 dim 1 : vector<8x512xf32>, i32 -> vector<8x512xf32>
    %399 = arith.extui %397 : vector<1x512xi1> to vector<1x512xi32>
    %400 = arith.sitofp %399 : vector<1x512xi32> to vector<1x512xf32>
    %401 = vector.broadcast %400 : vector<1x512xf32> to vector<8x512xf32>
    %402 = arith.mulf %398, %401 : vector<8x512xf32>
    %c6_175 = arith.constant 6 : index
    %c0_176 = arith.constant 0 : index
    %c0_177 = arith.constant 0 : index
    %403 = vector.load %arg4[%c6_175, %c0_176, %c0_177] : memref<9x8x8xf32, #tpu.memory_space<vmem>>, vector<1x8x8xf32>
    %404 = vector.shape_cast %403 : vector<1x8x8xf32> to vector<8x8xf32>
    %cst_178 = arith.constant dense<0.000000e+00> : vector<8x512xf32>
    %405 = tpu.matmul %404, %402, %cst_178 {dimension_numbers = #tpu.dot_dimension_numbers<[1], [0], [0], [1], [0, 0, 1, 1], [], []>} : vector<8x8xf32>, vector<8x512xf32>, vector<8x512xf32> -> vector<8x512xf32>
    %406 = arith.addf %378, %405 : vector<8x512xf32>
    %c1_i32_179 = arith.constant 1 : i32
    %407 = vector.broadcast %c1_i32_179 : i32 to vector<1x512xi32>
    %408 = arith.addi %0, %407 : vector<1x512xi32>
    %c0_i32_180 = arith.constant 0 : i32
    %409 = vector.broadcast %c0_i32_180 : i32 to vector<1x512xi32>
    %410 = arith.cmpi sge, %408, %409 : vector<1x512xi32>
    %c1_i32_181 = arith.constant 1 : i32
    %411 = vector.broadcast %c1_i32_181 : i32 to vector<1x512xi32>
    %412 = arith.addi %0, %411 : vector<1x512xi32>
    %c16_i32_182 = arith.constant 16 : i32
    %413 = vector.broadcast %c16_i32_182 : i32 to vector<1x512xi32>
    %414 = arith.cmpi slt, %412, %413 : vector<1x512xi32>
    %415 = arith.andi %410, %414 : vector<1x512xi1>
    %c0_i32_183 = arith.constant 0 : i32
    %416 = vector.broadcast %c0_i32_183 : i32 to vector<1x512xi32>
    %417 = arith.addi %1, %416 : vector<1x512xi32>
    %c0_i32_184 = arith.constant 0 : i32
    %418 = vector.broadcast %c0_i32_184 : i32 to vector<1x512xi32>
    %419 = arith.cmpi sge, %417, %418 : vector<1x512xi32>
    %420 = arith.andi %415, %419 : vector<1x512xi1>
    %c0_i32_185 = arith.constant 0 : i32
    %421 = vector.broadcast %c0_i32_185 : i32 to vector<1x512xi32>
    %422 = arith.addi %1, %421 : vector<1x512xi32>
    %c16_i32_186 = arith.constant 16 : i32
    %423 = vector.broadcast %c16_i32_186 : i32 to vector<1x512xi32>
    %424 = arith.cmpi slt, %422, %423 : vector<1x512xi32>
    %425 = arith.andi %420, %424 : vector<1x512xi1>
    %c496_i32_187 = arith.constant 496 : i32
    %426 = tpu.dynamic_rotate %235 by %c496_i32_187 dim 1 : vector<8x512xf32>, i32 -> vector<8x512xf32>
    %427 = arith.extui %425 : vector<1x512xi1> to vector<1x512xi32>
    %428 = arith.sitofp %427 : vector<1x512xi32> to vector<1x512xf32>
    %429 = vector.broadcast %428 : vector<1x512xf32> to vector<8x512xf32>
    %430 = arith.mulf %426, %429 : vector<8x512xf32>
    %c7_188 = arith.constant 7 : index
    %c0_189 = arith.constant 0 : index
    %c0_190 = arith.constant 0 : index
    %431 = vector.load %arg4[%c7_188, %c0_189, %c0_190] : memref<9x8x8xf32, #tpu.memory_space<vmem>>, vector<1x8x8xf32>
    %432 = vector.shape_cast %431 : vector<1x8x8xf32> to vector<8x8xf32>
    %cst_191 = arith.constant dense<0.000000e+00> : vector<8x512xf32>
    %433 = tpu.matmul %432, %430, %cst_191 {dimension_numbers = #tpu.dot_dimension_numbers<[1], [0], [0], [1], [0, 0, 1, 1], [], []>} : vector<8x8xf32>, vector<8x512xf32>, vector<8x512xf32> -> vector<8x512xf32>
    %434 = arith.addf %406, %433 : vector<8x512xf32>
    %c1_i32_192 = arith.constant 1 : i32
    %435 = vector.broadcast %c1_i32_192 : i32 to vector<1x512xi32>
    %436 = arith.addi %0, %435 : vector<1x512xi32>
    %c0_i32_193 = arith.constant 0 : i32
    %437 = vector.broadcast %c0_i32_193 : i32 to vector<1x512xi32>
    %438 = arith.cmpi sge, %436, %437 : vector<1x512xi32>
    %c1_i32_194 = arith.constant 1 : i32
    %439 = vector.broadcast %c1_i32_194 : i32 to vector<1x512xi32>
    %440 = arith.addi %0, %439 : vector<1x512xi32>
    %c16_i32_195 = arith.constant 16 : i32
    %441 = vector.broadcast %c16_i32_195 : i32 to vector<1x512xi32>
    %442 = arith.cmpi slt, %440, %441 : vector<1x512xi32>
    %443 = arith.andi %438, %442 : vector<1x512xi1>
    %c1_i32_196 = arith.constant 1 : i32
    %444 = vector.broadcast %c1_i32_196 : i32 to vector<1x512xi32>
    %445 = arith.addi %1, %444 : vector<1x512xi32>
    %c0_i32_197 = arith.constant 0 : i32
    %446 = vector.broadcast %c0_i32_197 : i32 to vector<1x512xi32>
    %447 = arith.cmpi sge, %445, %446 : vector<1x512xi32>
    %448 = arith.andi %443, %447 : vector<1x512xi1>
    %c1_i32_198 = arith.constant 1 : i32
    %449 = vector.broadcast %c1_i32_198 : i32 to vector<1x512xi32>
    %450 = arith.addi %1, %449 : vector<1x512xi32>
    %c16_i32_199 = arith.constant 16 : i32
    %451 = vector.broadcast %c16_i32_199 : i32 to vector<1x512xi32>
    %452 = arith.cmpi slt, %450, %451 : vector<1x512xi32>
    %453 = arith.andi %448, %452 : vector<1x512xi1>
    %c495_i32_200 = arith.constant 495 : i32
    %454 = tpu.dynamic_rotate %235 by %c495_i32_200 dim 1 : vector<8x512xf32>, i32 -> vector<8x512xf32>
    %455 = arith.extui %453 : vector<1x512xi1> to vector<1x512xi32>
    %456 = arith.sitofp %455 : vector<1x512xi32> to vector<1x512xf32>
    %457 = vector.broadcast %456 : vector<1x512xf32> to vector<8x512xf32>
    %458 = arith.mulf %454, %457 : vector<8x512xf32>
    %c8_201 = arith.constant 8 : index
    %c0_202 = arith.constant 0 : index
    %c0_203 = arith.constant 0 : index
    %459 = vector.load %arg4[%c8_201, %c0_202, %c0_203] : memref<9x8x8xf32, #tpu.memory_space<vmem>>, vector<1x8x8xf32>
    %460 = vector.shape_cast %459 : vector<1x8x8xf32> to vector<8x8xf32>
    %cst_204 = arith.constant dense<0.000000e+00> : vector<8x512xf32>
    %461 = tpu.matmul %460, %458, %cst_204 {dimension_numbers = #tpu.dot_dimension_numbers<[1], [0], [0], [1], [0, 0, 1, 1], [], []>} : vector<8x8xf32>, vector<8x512xf32>, vector<8x512xf32> -> vector<8x512xf32>
    %462 = arith.addf %434, %461 : vector<8x512xf32>
    %cst_205 = arith.constant 0.000000e+00 : f32
    %463 = vector.broadcast %cst_205 : f32 to vector<8x512xf32>
    %464 = arith.cmpf ogt, %462, %463 : vector<8x512xf32>
    %cst_206 = arith.constant 2.000000e-01 : f32
    %465 = vector.broadcast %cst_206 : f32 to vector<8x512xf32>
    %466 = arith.mulf %465, %462 : vector<8x512xf32>
    %467 = arith.select %464, %462, %466 : vector<8x512xi1>, vector<8x512xf32>
    %c0_207 = arith.constant 0 : index
    %c0_208 = arith.constant 0 : index
    %c0_209 = arith.constant 0 : index
    %468 = vector.load %arg5[%c0_207, %c0_208, %c0_209] : memref<1x8x512xf32, #tpu.memory_space<vmem>>, vector<1x8x512xf32>
    %469 = vector.shape_cast %468 : vector<1x8x512xf32> to vector<8x512xf32>
    %470 = vector.shape_cast %467 : vector<8x512xf32> to vector<1x8x512xf32>
    tpu.vector_store %arg5[%c0_207, %c0_208, %c0_209], %470 {strides = array<i32>} : memref<1x8x512xf32, #tpu.memory_space<vmem>>, vector<1x8x512xf32>,
    return
  }
  func.func @transform_0(%arg0: i32) -> (i32, i32, i32) {
    %c0_i32 = arith.constant 0 : i32
    %c0_i32_0 = arith.constant 0 : i32
    %c0_i32_1 = arith.constant 0 : i32
    return %arg0, %c0_i32, %c0_i32_0 : i32, i32, i32
  }
  func.func @transform_1(%arg0: i32) -> (i32, i32) {
    %c0_i32 = arith.constant 0 : i32
    %c0_i32_0 = arith.constant 0 : i32
    %c0_i32_1 = arith.constant 0 : i32
    return %c0_i32, %c0_i32_0 : i32, i32
  }
  func.func @transform_2(%arg0: i32) -> (i32, i32, i32) {
    %c0_i32 = arith.constant 0 : i32
    %c0_i32_0 = arith.constant 0 : i32
    %c0_i32_1 = arith.constant 0 : i32
    %c0_i32_2 = arith.constant 0 : i32
    return %c0_i32, %c0_i32_0, %c0_i32_1 : i32, i32, i32
  }
  func.func @transform_3(%arg0: i32) -> (i32, i32, i32) {
    %c0_i32 = arith.constant 0 : i32
    %c0_i32_0 = arith.constant 0 : i32
    %c0_i32_1 = arith.constant 0 : i32
    %c0_i32_2 = arith.constant 0 : i32
    return %c0_i32, %c0_i32_0, %c0_i32_1 : i32, i32, i32
  }
  func.func @transform_4(%arg0: i32) -> (i32, i32, i32) {
    %c0_i32 = arith.constant 0 : i32
    %c0_i32_0 = arith.constant 0 : i32
    %c0_i32_1 = arith.constant 0 : i32
    return %arg0, %c0_i32, %c0_i32_0 : i32, i32, i32
  }
}

</mosaic_0001>

<llo_original>
// kernel: tpu_custom_call.1
$region0: #{tpu_custom_call.1}
  #allocation0 [shape = 'u32[]', space=smem, size = 0x4, offset = 0x4, fixed_abs, tag = 'smem constant byte address 0x4 - core index']
  #allocation1 [shape = 'u32[72,128]{1,0:T(1,128)}', space=vmem, size = 0x9000, scoped, tag = 'internal scratch']
  %s0 = inlined_call_operand.vmem [shape: f32[1,4,512], index: 0, kind: input, shape index: {}]
  %s1 = inlined_call_operand.vmem [shape: s32[2,512], index: 1, kind: input, shape index: {}]
  %s2 = inlined_call_operand.vmem [shape: f32[9,8,4], index: 2, kind: input, shape index: {}]
  %s3 = inlined_call_operand.vmem [shape: f32[9,8,8], index: 3, kind: input, shape index: {}]
  %s4 = inlined_call_operand.hbm [shape: f32[1,8,512], index: 4, kind: output, shape index: {}]
  %s5 = sld [smem:[#allocation0]]
  $region26: #{tpu_custom_call.1} parent=0
    _
  %s7 = ssub.s32 1, %s5
  %s8 = scalar_select 0, %s7, %s5
  $region1: #{tpu_custom_call.1} parent=0
    #allocation2 [shape = 'u8[16384]{0}', space=vmem, size = 0x4000, scoped, tag = 'output window, operand 0, single buffered']
    #allocation3 [shape = 's32[1]{0}', space=sflag, size = 0x4, scoped, tag = 'scoped memory for tpu_custom_call.1']
    %9 = vsyncpa [#allocation3], 0
    // Predicated region
    $region2: #{tpu_custom_call.1} parent=1 // pred_check
      _
    $region3: #{tpu_custom_call.1} parent=1 // pred_check_branch
      %11 = sbr.rel (0) target = $region5
    $region4: #{tpu_custom_call.1} parent=1 // pred_region
      _
    $region5: #{tpu_custom_call.1} parent=1 // pred_fallthru
      _
    // Predicated region
    $region6: #{tpu_custom_call.1} parent=1 // pred_check
      _
    $region7: #{tpu_custom_call.1} parent=1 // pred_check_branch
      %13 = sbr.rel (0) target = $region9
    $region8: #{tpu_custom_call.1} parent=1 // pred_region
      _
    $region9: #{tpu_custom_call.1} parent=1 // pred_fallthru
      _
    // Predicated region
    $region10: #{tpu_custom_call.1} parent=1 // pred_check
      _
    $region11: #{tpu_custom_call.1} parent=1 // pred_check_branch
      %15 = sbr.rel (0) target = $region13
    $region12: #{tpu_custom_call.1} parent=1 // pred_region
      _
    $region13: #{tpu_custom_call.1} parent=1 // pred_fallthru
      _
    // Predicated region
    $region14: #{tpu_custom_call.1} parent=1 // pred_check
      _
    $region15: #{tpu_custom_call.1} parent=1 // pred_check_branch
      %17 = sbr.rel (0) target = $region17
    $region16: #{tpu_custom_call.1} parent=1 // pred_region
      _
    $region17: #{tpu_custom_call.1} parent=1 // pred_fallthru
      _
    %v18 = vld [vmem:[%s1] ss:$2 sm:$0xf]
    %s19 = scalar_lea.vmem %s1, 1
    %v20 = vld [vmem:[%s19] ss:$2 sm:$0xf]
    %v21 = vld [vmem:[%s0] sm:$0xff]
    %v22 = vld [vmem:[%s0 + $0x8] sm:$0xff]
    %s23 = scalar_lea.vmem %s2, 32
    %v24 = vld [vmem:[%s23] sm:$0xff]
    %v25 = vadd.s32 %v18, 4294967295
    %vm26 = vcmp.ge.s32.totalorder %v25, 0
    %vm27 = vcmp.lt.s32.totalorder %v25, 16
    %vm28 = vmand %vm26, %vm27
    %v29 = vadd.s32 %v20, 4294967295
    %vm30 = vcmp.ge.s32.totalorder %v29, 0
    %vm31 = vmand %vm28, %vm30
    %vm32 = vcmp.lt.s32.totalorder %v29, 16
    %vm33 = vmand %vm31, %vm32
    %36 = vst [vmem:[#allocation1] ss:$2 sm:$0xff] %v21
    %s37 = scalar_lea.vmem [#allocation1], 16
    %38 = vst [vmem:[%s37] ss:$2 sm:$0xff] %v22
    %v39 = vld.sshfl [vmem:[#allocation1] sm:$0xff pattern:$0x75316420]
    %v40 = vld.sshfl [vmem:[#allocation1 + $0x8] sm:$0xff pattern:$0x75316420]
    %v41 = vld.sshfl [vmem:[#allocation1 + $0x10] sm:$0xff pattern:$0x75316420]
    %v42 = vld.sshfl [vmem:[#allocation1 + $0x18] sm:$0xff pattern:$0x75316420]
    %47 = vrot.lane.b32.xlu0 %v39, 17
    %v48 = vpop.permute.xlu0 %47
    %49 = vrot.lane.b32.xlu0 %v40, 17
    %v50 = vpop.permute.xlu0 %49
    %51 = vrot.lane.b32.xlu0 %v41, 17
    %v52 = vpop.permute.xlu0 %51
    %53 = vrot.lane.b32.xlu0 %v42, 17
    %v54 = vpop.permute.xlu0 %53
    %v55 = vlaneseq
    %v56 = vand.u32 %v55, 127
    %vm57 = vcmp.lt.s32.totalorder %v56, 17
    %v58 = vsel %vm57, %v52, %v54
    %v59 = vsel %vm57, %v50, %v52
    %v60 = vsel %vm57, %v48, %v50
    %v61 = vsel %vm57, %v54, %v48
    %v62 = vsel %vm33, 1, 0
    %v63 = vcvt.s32.f32 %v62
    %v65 = vperm.slane %v63, 0
    %v66 = vperm.slane %v63, 1
    %v67 = vperm.slane %v63, 2
    %v68 = vperm.slane %v63, 3
    %v73 = vmul.f32 %v61, %v65
    %v74 = vmul.f32 %v60, %v66
    %v75 = vmul.f32 %v59, %v67
    %v76 = vmul.f32 %v58, %v68
    %v77 = vld [vmem:[%s2] sm:$0xff]
    %vm78 = vcmask 31744
    %v80 = vsel %vm78, %v77, 0
    %vm82 = vcmask 1043456
    %v84 = vsel %vm82, %v73, 0
    %v87 = vsel %vm82, %v74, 0
    %v90 = vsel %vm82, %v75, 0
    %v93 = vsel %vm82, %v76, 0
    %95 = vmatpush.msra.mxu0 0.0
    %96 = vmatpush.msra.mxu0 0.0
    %97 = vmatpush.msra.mxu0 0.0
    %98 = vmatpush.msra.mxu0 0.0
    %99 = vmatpush.msra.mxu0 0.0
    %100 = vmatpush.msra.mxu0 0.0
    %101 = vmatpush.msra.mxu0 0.0
    %102 = vmatpush.msra.mxu0 0.0
    %103 = vmatpush.msra.mxu0 0.0
    %104 = vmatpush.msra.mxu0 0.0
    %105 = vmatpush.msra.mxu0 0.0
    %106 = vmatpush.msra.mxu0 0.0
    %107 = vmatpush.msra.mxu0 0.0
    %108 = vmatpush.msra.mxu0 0.0
    %109 = vmatpush.msra.mxu0 0.0
    %110 = vmatpush.msra.mxu0 %v84
    %111 = vmatmul.f32.gmra.mxu0 %v80
    %v112 = vpop.f32.mrf.mxu0
    %v113 = vadd.f32 0.0, %v112
    %114 = vdwg.mxu0
    %115 = vmatpush.msra.mxu0 0.0
    %116 = vmatpush.msra.mxu0 0.0
    %117 = vmatpush.msra.mxu0 0.0
    %118 = vmatpush.msra.mxu0 0.0
    %119 = vmatpush.msra.mxu0 0.0
    %120 = vmatpush.msra.mxu0 0.0
    %121 = vmatpush.msra.mxu0 0.0
    %122 = vmatpush.msra.mxu0 0.0
    %123 = vmatpush.msra.mxu0 0.0
    %124 = vmatpush.msra.mxu0 0.0
    %125 = vmatpush.msra.mxu0 0.0
    %126 = vmatpush.msra.mxu0 0.0
    %127 = vmatpush.msra.mxu0 0.0
    %128 = vmatpush.msra.mxu0 0.0
    %129 = vmatpush.msra.mxu0 0.0
    %130 = vmatpush.msra.mxu0 %v87
    %131 = vmatmul.f32.gmra.mxu0 %v80
    %v132 = vpop.f32.mrf.mxu0
    %v133 = vadd.f32 0.0, %v132
    %134 = vdwg.mxu0
    %135 = vmatpush.msra.mxu0 0.0
    %136 = vmatpush.msra.mxu0 0.0
    %137 = vmatpush.msra.mxu0 0.0
    %138 = vmatpush.msra.mxu0 0.0
    %139 = vmatpush.msra.mxu0 0.0
    %140 = vmatpush.msra.mxu0 0.0
    %141 = vmatpush.msra.mxu0 0.0
    %142 = vmatpush.msra.mxu0 0.0
    %143 = vmatpush.msra.mxu0 0.0
    %144 = vmatpush.msra.mxu0 0.0
    %145 = vmatpush.msra.mxu0 0.0
    %146 = vmatpush.msra.mxu0 0.0
    %147 = vmatpush.msra.mxu0 0.0
    %148 = vmatpush.msra.mxu0 0.0
    %149 = vmatpush.msra.mxu0 0.0
    %150 = vmatpush.msra.mxu0 %v90
    %151 = vmatmul.f32.gmra.mxu0 %v80
    %v152 = vpop.f32.mrf.mxu0
    %v153 = vadd.f32 0.0, %v152
    %154 = vdwg.mxu0
    %155 = vmatpush.msra.mxu0 0.0
    %156 = vmatpush.msra.mxu0 0.0
    %157 = vmatpush.msra.mxu0 0.0
    %158 = vmatpush.msra.mxu0 0.0
    %159 = vmatpush.msra.mxu0 0.0
    %160 = vmatpush.msra.mxu0 0.0
    %161 = vmatpush.msra.mxu0 0.0
    %162 = vmatpush.msra.mxu0 0.0
    %163 = vmatpush.msra.mxu0 0.0
    %164 = vmatpush.msra.mxu0 0.0
    %165 = vmatpush.msra.mxu0 0.0
    %166 = vmatpush.msra.mxu0 0.0
    %167 = vmatpush.msra.mxu0 0.0
    %168 = vmatpush.msra.mxu0 0.0
    %169 = vmatpush.msra.mxu0 0.0
    %170 = vmatpush.msra.mxu0 %v93
    %171 = vmatmul.f32.gmra.mxu0 %v80
    %v172 = vpop.f32.mrf.mxu0
    %v173 = vadd.f32 0.0, %v172
    %174 = vdwg.mxu0
    %175 = vst [vmem:[#allocation1] ss:$2 sm:$0xff] %v21
    %s176 = scalar_lea.vmem [#allocation1], 16
    %177 = vst [vmem:[%s176] ss:$2 sm:$0xff] %v22
    %v178 = vld.sshfl [vmem:[#allocation1] sm:$0xff pattern:$0x75316420]
    %v179 = vld.sshfl [vmem:[#allocation1 + $0x8] sm:$0xff pattern:$0x75316420]
    %v180 = vld.sshfl [vmem:[#allocation1 + $0x10] sm:$0xff pattern:$0x75316420]
    %v181 = vld.sshfl [vmem:[#allocation1 + $0x18] sm:$0xff pattern:$0x75316420]
    %v183 = vsel %vm78, %v24, 0
    %v185 = vsel %vm82, %v178, 0
    %v187 = vsel %vm82, %v179, 0
    %v189 = vsel %vm82, %v180, 0
    %v191 = vsel %vm82, %v181, 0
    %193 = vmatpush.msra.mxu0 0.0
    %194 = vmatpush.msra.mxu0 0.0
    %195 = vmatpush.msra.mxu0 0.0
    %196 = vmatpush.msra.mxu0 0.0
    %197 = vmatpush.msra.mxu0 0.0
    %198 = vmatpush.msra.mxu0 0.0
    %199 = vmatpush.msra.mxu0 0.0
    %200 = vmatpush.msra.mxu0 0.0
    %201 = vmatpush.msra.mxu0 0.0
    %202 = vmatpush.msra.mxu0 0.0
    %203 = vmatpush.msra.mxu0 0.0
    %204 = vmatpush.msra.mxu0 0.0
    %205 = vmatpush.msra.mxu0 0.0
    %206 = vmatpush.msra.mxu0 0.0
    %207 = vmatpush.msra.mxu0 0.0
    %208 = vmatpush.msra.mxu0 %v185
    %209 = vmatmul.f32.gmra.mxu0 %v183
    %v210 = vpop.f32.mrf.mxu0
    %v211 = vadd.f32 %v113, %v210
    %212 = vdwg.mxu0
    %213 = vmatpush.msra.mxu0 0.0
    %214 = vmatpush.msra.mxu0 0.0
    %215 = vmatpush.msra.mxu0 0.0
    %216 = vmatpush.msra.mxu0 0.0
    %217 = vmatpush.msra.mxu0 0.0
    %218 = vmatpush.msra.mxu0 0.0
    %219 = vmatpush.msra.mxu0 0.0
    %220 = vmatpush.msra.mxu0 0.0
    %221 = vmatpush.msra.mxu0 0.0
    %222 = vmatpush.msra.mxu0 0.0
    %223 = vmatpush.msra.mxu0 0.0
    %224 = vmatpush.msra.mxu0 0.0
    %225 = vmatpush.msra.mxu0 0.0
    %226 = vmatpush.msra.mxu0 0.0
    %227 = vmatpush.msra.mxu0 0.0
    %228 = vmatpush.msra.mxu0 %v187
    %229 = vmatmul.f32.gmra.mxu0 %v183
    %v230 = vpop.f32.mrf.mxu0
    %v231 = vadd.f32 %v133, %v230
    %232 = vdwg.mxu0
    %233 = vmatpush.msra.mxu0 0.0
    %234 = vmatpush.msra.mxu0 0.0
    %235 = vmatpush.msra.mxu0 0.0
    %236 = vmatpush.msra.mxu0 0.0
    %237 = vmatpush.msra.mxu0 0.0
    %238 = vmatpush.msra.mxu0 0.0
    %239 = vmatpush.msra.mxu0 0.0
    %240 = vmatpush.msra.mxu0 0.0
    %241 = vmatpush.msra.mxu0 0.0
    %242 = vmatpush.msra.mxu0 0.0
    %243 = vmatpush.msra.mxu0 0.0
    %244 = vmatpush.msra.mxu0 0.0
    %245 = vmatpush.msra.mxu0 0.0
    %246 = vmatpush.msra.mxu0 0.0
    %247 = vmatpush.msra.mxu0 0.0
    %248 = vmatpush.msra.mxu0 %v189
    %249 = vmatmul.f32.gmra.mxu0 %v183
    %v250 = vpop.f32.mrf.mxu0
    %v251 = vadd.f32 %v153, %v250
    %252 = vdwg.mxu0
    %253 = vmatpush.msra.mxu0 0.0
    %254 = vmatpush.msra.mxu0 0.0
    %255 = vmatpush.msra.mxu0 0.0
    %256 = vmatpush.msra.mxu0 0.0
    %257 = vmatpush.msra.mxu0 0.0
    %258 = vmatpush.msra.mxu0 0.0
    %259 = vmatpush.msra.mxu0 0.0
    %260 = vmatpush.msra.mxu0 0.0
    %261 = vmatpush.msra.mxu0 0.0
    %262 = vmatpush.msra.mxu0 0.0
    %263 = vmatpush.msra.mxu0 0.0
    %264 = vmatpush.msra.mxu0 0.0
    %265 = vmatpush.msra.mxu0 0.0
    %266 = vmatpush.msra.mxu0 0.0
    %267 = vmatpush.msra.mxu0 0.0
    %268 = vmatpush.msra.mxu0 %v191
    %269 = vmatmul.f32.gmra.mxu0 %v183
    %v270 = vpop.f32.mrf.mxu0
    %v271 = vadd.f32 %v173, %v270
    %272 = vdwg.mxu0
    %vm273 = vcmp.ge.s32.totalorder %v20, 0
    %vm274 = vmand %vm28, %vm273
    %vm275 = vcmp.lt.s32.totalorder %v20, 16
    %vm276 = vmand %vm274, %vm275
    %277 = vst [vmem:[#allocation1] ss:$2 sm:$0xff] %v21
    %s278 = scalar_lea.vmem [#allocation1], 16
    %279 = vst [vmem:[%s278] ss:$2 sm:$0xff] %v22
    %v280 = vld.sshfl [vmem:[#allocation1] sm:$0xff pattern:$0x75316420]
    %v281 = vld.sshfl [vmem:[#allocation1 + $0x8] sm:$0xff pattern:$0x75316420]
    %v282 = vld.sshfl [vmem:[#allocation1 + $0x10] sm:$0xff pattern:$0x75316420]
    %v283 = vld.sshfl [vmem:[#allocation1 + $0x18] sm:$0xff pattern:$0x75316420]
    %288 = vrot.lane.b32.xlu0 %v280, 16
    %v289 = vpop.permute.xlu0 %288
    %290 = vrot.lane.b32.xlu0 %v281, 16
    %v291 = vpop.permute.xlu0 %290
    %292 = vrot.lane.b32.xlu0 %v282, 16
    %v293 = vpop.permute.xlu0 %292
    %294 = vrot.lane.b32.xlu0 %v283, 16
    %v295 = vpop.permute.xlu0 %294
    %vm296 = vcmp.lt.s32.totalorder %v56, 16
    %v297 = vsel %vm296, %v293, %v295
    %v298 = vsel %vm296, %v291, %v293
    %v299 = vsel %vm296, %v289, %v291
    %v300 = vsel %vm296, %v295, %v289
    %v301 = vsel %vm276, 1, 0
    %v302 = vcvt.s32.f32 %v301
    %v304 = vperm.slane %v302, 0
    %v305 = vperm.slane %v302, 1
    %v306 = vperm.slane %v302, 2
    %v307 = vperm.slane %v302, 3
    %v312 = vmul.f32 %v300, %v304
    %v313 = vmul.f32 %v299, %v305
    %v314 = vmul.f32 %v298, %v306
    %v315 = vmul.f32 %v297, %v307
    %s316 = scalar_lea.vmem %s2, 8
    %v317 = vld [vmem:[%s316] sm:$0xff]
    %v319 = vsel %vm78, %v317, 0
    %v322 = vsel %vm82, %v312, 0
    %v325 = vsel %vm82, %v313, 0
    %v328 = vsel %vm82, %v314, 0
    %v331 = vsel %vm82, %v315, 0
    %333 = vmatpush.msra.mxu0 0.0
    %334 = vmatpush.msra.mxu0 0.0
    %335 = vmatpush.msra.mxu0 0.0
    %336 = vmatpush.msra.mxu0 0.0
    %337 = vmatpush.msra.mxu0 0.0
    %338 = vmatpush.msra.mxu0 0.0
    %339 = vmatpush.msra.mxu0 0.0
    %340 = vmatpush.msra.mxu0 0.0
    %341 = vmatpush.msra.mxu0 0.0
    %342 = vmatpush.msra.mxu0 0.0
    %343 = vmatpush.msra.mxu0 0.0
    %344 = vmatpush.msra.mxu0 0.0
    %345 = vmatpush.msra.mxu0 0.0
    %346 = vmatpush.msra.mxu0 0.0
    %347 = vmatpush.msra.mxu0 0.0
    %348 = vmatpush.msra.mxu0 %v322
    %349 = vmatmul.f32.gmra.mxu0 %v319
    %v350 = vpop.f32.mrf.mxu0
    %v351 = vadd.f32 0.0, %v350
    %352 = vdwg.mxu0
    %353 = vmatpush.msra.mxu0 0.0
    %354 = vmatpush.msra.mxu0 0.0
    %355 = vmatpush.msra.mxu0 0.0
    %356 = vmatpush.msra.mxu0 0.0
    %357 = vmatpush.msra.mxu0 0.0
    %358 = vmatpush.msra.mxu0 0.0
    %359 = vmatpush.msra.mxu0 0.0
    %360 = vmatpush.msra.mxu0 0.0
    %361 = vmatpush.msra.mxu0 0.0
    %362 = vmatpush.msra.mxu0 0.0
    %363 = vmatpush.msra.mxu0 0.0
    %364 = vmatpush.msra.mxu0 0.0
    %365 = vmatpush.msra.mxu0 0.0
    %366 = vmatpush.msra.mxu0 0.0
    %367 = vmatpush.msra.mxu0 0.0
    %368 = vmatpush.msra.mxu0 %v325
    %369 = vmatmul.f32.gmra.mxu0 %v319
    %v370 = vpop.f32.mrf.mxu0
    %v371 = vadd.f32 0.0, %v370
    %372 = vdwg.mxu0
    %373 = vmatpush.msra.mxu0 0.0
    %374 = vmatpush.msra.mxu0 0.0
    %375 = vmatpush.msra.mxu0 0.0
    %376 = vmatpush.msra.mxu0 0.0
    %377 = vmatpush.msra.mxu0 0.0
    %378 = vmatpush.msra.mxu0 0.0
    %379 = vmatpush.msra.mxu0 0.0
    %380 = vmatpush.msra.mxu0 0.0
    %381 = vmatpush.msra.mxu0 0.0
    %382 = vmatpush.msra.mxu0 0.0
    %383 = vmatpush.msra.mxu0 0.0
    %384 = vmatpush.msra.mxu0 0.0
    %385 = vmatpush.msra.mxu0 0.0
    %386 = vmatpush.msra.mxu0 0.0
    %387 = vmatpush.msra.mxu0 0.0
    %388 = vmatpush.msra.mxu0 %v328
    %389 = vmatmul.f32.gmra.mxu0 %v319
    %v390 = vpop.f32.mrf.mxu0
    %v391 = vadd.f32 0.0, %v390
    %392 = vdwg.mxu0
    %393 = vmatpush.msra.mxu0 0.0
    %394 = vmatpush.msra.mxu0 0.0
    %395 = vmatpush.msra.mxu0 0.0
    %396 = vmatpush.msra.mxu0 0.0
    %397 = vmatpush.msra.mxu0 0.0
    %398 = vmatpush.msra.mxu0 0.0
    %399 = vmatpush.msra.mxu0 0.0
    %400 = vmatpush.msra.mxu0 0.0
    %401 = vmatpush.msra.mxu0 0.0
    %402 = vmatpush.msra.mxu0 0.0
    %403 = vmatpush.msra.mxu0 0.0
    %404 = vmatpush.msra.mxu0 0.0
    %405 = vmatpush.msra.mxu0 0.0
    %406 = vmatpush.msra.mxu0 0.0
    %407 = vmatpush.msra.mxu0 0.0
    %408 = vmatpush.msra.mxu0 %v331
    %409 = vmatmul.f32.gmra.mxu0 %v319
    %v410 = vpop.f32.mrf.mxu0
    %v411 = vadd.f32 0.0, %v410
    %412 = vdwg.mxu0
    %v413 = vadd.f32 %v211, %v351
    %v414 = vadd.f32 %v231, %v371
    %v415 = vadd.f32 %v251, %v391
    %v416 = vadd.f32 %v271, %v411
    %v417 = vadd.s32 %v20, 1
    %vm418 = vcmp.ge.s32.totalorder %v417, 0
    %vm419 = vmand %vm28, %vm418
    %vm420 = vcmp.lt.s32.totalorder %v417, 16
    %vm421 = vmand %vm419, %vm420
    %422 = vst [vmem:[#allocation1] ss:$2 sm:$0xff] %v21
    %s423 = scalar_lea.vmem [#allocation1], 16
    %424 = vst [vmem:[%s423] ss:$2 sm:$0xff] %v22
    %v425 = vld.sshfl [vmem:[#allocation1] sm:$0xff pattern:$0x75316420]
    %v426 = vld.sshfl [vmem:[#allocation1 + $0x8] sm:$0xff pattern:$0x75316420]
    %v427 = vld.sshfl [vmem:[#allocation1 + $0x10] sm:$0xff pattern:$0x75316420]
    %v428 = vld.sshfl [vmem:[#allocation1 + $0x18] sm:$0xff pattern:$0x75316420]
    %433 = vrot.lane.b32.xlu0 %v425, 15
    %v434 = vpop.permute.xlu0 %433
    %435 = vrot.lane.b32.xlu0 %v426, 15
    %v436 = vpop.permute.xlu0 %435
    %437 = vrot.lane.b32.xlu0 %v427, 15
    %v438 = vpop.permute.xlu0 %437
    %439 = vrot.lane.b32.xlu0 %v428, 15
    %v440 = vpop.permute.xlu0 %439
    %vm441 = vcmp.lt.s32.totalorder %v56, 15
    %v442 = vsel %vm441, %v438, %v440
    %v443 = vsel %vm441, %v436, %v438
    %v444 = vsel %vm441, %v434, %v436
    %v445 = vsel %vm441, %v440, %v434
    %v446 = vsel %vm421, 1, 0
    %v447 = vcvt.s32.f32 %v446
    %v449 = vperm.slane %v447, 0
    %v450 = vperm.slane %v447, 1
    %v451 = vperm.slane %v447, 2
    %v452 = vperm.slane %v447, 3
    %v457 = vmul.f32 %v445, %v449
    %v458 = vmul.f32 %v444, %v450
    %v459 = vmul.f32 %v443, %v451
    %v460 = vmul.f32 %v442, %v452
    %s461 = scalar_lea.vmem %s2, 16
    %v462 = vld [vmem:[%s461] sm:$0xff]
    %v464 = vsel %vm78, %v462, 0
    %v467 = vsel %vm82, %v457, 0
    %v470 = vsel %vm82, %v458, 0
    %v473 = vsel %vm82, %v459, 0
    %v476 = vsel %vm82, %v460, 0
    %478 = vmatpush.msra.mxu0 0.0
    %479 = vmatpush.msra.mxu0 0.0
    %480 = vmatpush.msra.mxu0 0.0
    %481 = vmatpush.msra.mxu0 0.0
    %482 = vmatpush.msra.mxu0 0.0
    %483 = vmatpush.msra.mxu0 0.0
    %484 = vmatpush.msra.mxu0 0.0
    %485 = vmatpush.msra.mxu0 0.0
    %486 = vmatpush.msra.mxu0 0.0
    %487 = vmatpush.msra.mxu0 0.0
    %488 = vmatpush.msra.mxu0 0.0
    %489 = vmatpush.msra.mxu0 0.0
    %490 = vmatpush.msra.mxu0 0.0
    %491 = vmatpush.msra.mxu0 0.0
    %492 = vmatpush.msra.mxu0 0.0
    %493 = vmatpush.msra.mxu0 %v467
    %494 = vmatmul.f32.gmra.mxu0 %v464
    %v495 = vpop.f32.mrf.mxu0
    %v496 = vadd.f32 0.0, %v495
    %497 = vdwg.mxu0
    %498 = vmatpush.msra.mxu0 0.0
    %499 = vmatpush.msra.mxu0 0.0
    %500 = vmatpush.msra.mxu0 0.0
    %501 = vmatpush.msra.mxu0 0.0
    %502 = vmatpush.msra.mxu0 0.0
    %503 = vmatpush.msra.mxu0 0.0
    %504 = vmatpush.msra.mxu0 0.0
    %505 = vmatpush.msra.mxu0 0.0
    %506 = vmatpush.msra.mxu0 0.0
    %507 = vmatpush.msra.mxu0 0.0
    %508 = vmatpush.msra.mxu0 0.0
    %509 = vmatpush.msra.mxu0 0.0
    %510 = vmatpush.msra.mxu0 0.0
    %511 = vmatpush.msra.mxu0 0.0
    %512 = vmatpush.msra.mxu0 0.0
    %513 = vmatpush.msra.mxu0 %v470
    %514 = vmatmul.f32.gmra.mxu0 %v464
    %v515 = vpop.f32.mrf.mxu0
    %v516 = vadd.f32 0.0, %v515
    %517 = vdwg.mxu0
    %518 = vmatpush.msra.mxu0 0.0
    %519 = vmatpush.msra.mxu0 0.0
    %520 = vmatpush.msra.mxu0 0.0
    %521 = vmatpush.msra.mxu0 0.0
    %522 = vmatpush.msra.mxu0 0.0
    %523 = vmatpush.msra.mxu0 0.0
    %524 = vmatpush.msra.mxu0 0.0
    %525 = vmatpush.msra.mxu0 0.0
    %526 = vmatpush.msra.mxu0 0.0
    %527 = vmatpush.msra.mxu0 0.0
    %528 = vmatpush.msra.mxu0 0.0
    %529 = vmatpush.msra.mxu0 0.0
    %530 = vmatpush.msra.mxu0 0.0
    %531 = vmatpush.msra.mxu0 0.0
    %532 = vmatpush.msra.mxu0 0.0
    %533 = vmatpush.msra.mxu0 %v473
    %534 = vmatmul.f32.gmra.mxu0 %v464
    %v535 = vpop.f32.mrf.mxu0
    %v536 = vadd.f32 0.0, %v535
    %537 = vdwg.mxu0
    %538 = vmatpush.msra.mxu0 0.0
    %539 = vmatpush.msra.mxu0 0.0
    %540 = vmatpush.msra.mxu0 0.0
    %541 = vmatpush.msra.mxu0 0.0
    %542 = vmatpush.msra.mxu0 0.0
    %543 = vmatpush.msra.mxu0 0.0
    %544 = vmatpush.msra.mxu0 0.0
    %545 = vmatpush.msra.mxu0 0.0
    %546 = vmatpush.msra.mxu0 0.0
    %547 = vmatpush.msra.mxu0 0.0
    %548 = vmatpush.msra.mxu0 0.0
    %549 = vmatpush.msra.mxu0 0.0
    %550 = vmatpush.msra.mxu0 0.0
    %551 = vmatpush.msra.mxu0 0.0
    %552 = vmatpush.msra.mxu0 0.0
    %553 = vmatpush.msra.mxu0 %v476
    %554 = vmatmul.f32.gmra.mxu0 %v464
    %v555 = vpop.f32.mrf.mxu0
    %v556 = vadd.f32 0.0, %v555
    %557 = vdwg.mxu0
    %v558 = vadd.f32 %v413, %v496
    %v559 = vadd.f32 %v414, %v516
    %v560 = vadd.f32 %v415, %v536
    %v561 = vadd.f32 %v416, %v556
    %vm562 = vcmp.ge.s32.totalorder %v18, 0
    %vm563 = vcmp.lt.s32.totalorder %v18, 16
    %vm564 = vmand %vm562, %vm563
    %vm565 = vmand %vm564, %vm30
    %vm566 = vmand %vm565, %vm32
    %567 = vst [vmem:[#allocation1] ss:$2 sm:$0xff] %v21
    %s568 = scalar_lea.vmem [#allocation1], 16
    %569 = vst [vmem:[%s568] ss:$2 sm:$0xff] %v22
    %v570 = vld.sshfl [vmem:[#allocation1] sm:$0xff pattern:$0x75316420]
    %v571 = vld.sshfl [vmem:[#allocation1 + $0x8] sm:$0xff pattern:$0x75316420]
    %v572 = vld.sshfl [vmem:[#allocation1 + $0x10] sm:$0xff pattern:$0x75316420]
    %v573 = vld.sshfl [vmem:[#allocation1 + $0x18] sm:$0xff pattern:$0x75316420]
    %578 = vrot.lane.b32.xlu0 %v570, 1
    %v579 = vpop.permute.xlu0 %578
    %580 = vrot.lane.b32.xlu0 %v571, 1
    %v581 = vpop.permute.xlu0 %580
    %582 = vrot.lane.b32.xlu0 %v572, 1
    %v583 = vpop.permute.xlu0 %582
    %584 = vrot.lane.b32.xlu0 %v573, 1
    %v585 = vpop.permute.xlu0 %584
    %vm586 = vcmp.lt.s32.totalorder %v56, 1
    %v587 = vsel %vm586, %v583, %v585
    %v588 = vsel %vm586, %v581, %v583
    %v589 = vsel %vm586, %v579, %v581
    %v590 = vsel %vm586, %v585, %v579
    %v591 = vsel %vm566, 1, 0
    %v592 = vcvt.s32.f32 %v591
    %v594 = vperm.slane %v592, 0
    %v595 = vperm.slane %v592, 1
    %v596 = vperm.slane %v592, 2
    %v597 = vperm.slane %v592, 3
    %v602 = vmul.f32 %v590, %v594
    %v603 = vmul.f32 %v589, %v595
    %v604 = vmul.f32 %v588, %v596
    %v605 = vmul.f32 %v587, %v597
    %s606 = scalar_lea.vmem %s2, 24
    %v607 = vld [vmem:[%s606] sm:$0xff]
    %v609 = vsel %vm78, %v607, 0
    %v612 = vsel %vm82, %v602, 0
    %v615 = vsel %vm82, %v603, 0
    %v618 = vsel %vm82, %v604, 0
    %v621 = vsel %vm82, %v605, 0
    %623 = vmatpush.msra.mxu0 0.0
    %624 = vmatpush.msra.mxu0 0.0
    %625 = vmatpush.msra.mxu0 0.0
    %626 = vmatpush.msra.mxu0 0.0
    %627 = vmatpush.msra.mxu0 0.0
    %628 = vmatpush.msra.mxu0 0.0
    %629 = vmatpush.msra.mxu0 0.0
    %630 = vmatpush.msra.mxu0 0.0
    %631 = vmatpush.msra.mxu0 0.0
    %632 = vmatpush.msra.mxu0 0.0
    %633 = vmatpush.msra.mxu0 0.0
    %634 = vmatpush.msra.mxu0 0.0
    %635 = vmatpush.msra.mxu0 0.0
    %636 = vmatpush.msra.mxu0 0.0
    %637 = vmatpush.msra.mxu0 0.0
    %638 = vmatpush.msra.mxu0 %v612
    %639 = vmatmul.f32.gmra.mxu0 %v609
    %v640 = vpop.f32.mrf.mxu0
    %v641 = vadd.f32 0.0, %v640
    %642 = vdwg.mxu0
    %643 = vmatpush.msra.mxu0 0.0
    %644 = vmatpush.msra.mxu0 0.0
    %645 = vmatpush.msra.mxu0 0.0
    %646 = vmatpush.msra.mxu0 0.0
    %647 = vmatpush.msra.mxu0 0.0
    %648 = vmatpush.msra.mxu0 0.0
    %649 = vmatpush.msra.mxu0 0.0
    %650 = vmatpush.msra.mxu0 0.0
    %651 = vmatpush.msra.mxu0 0.0
    %652 = vmatpush.msra.mxu0 0.0
    %653 = vmatpush.msra.mxu0 0.0
    %654 = vmatpush.msra.mxu0 0.0
    %655 = vmatpush.msra.mxu0 0.0
    %656 = vmatpush.msra.mxu0 0.0
    %657 = vmatpush.msra.mxu0 0.0
    %658 = vmatpush.msra.mxu0 %v615
    %659 = vmatmul.f32.gmra.mxu0 %v609
    %v660 = vpop.f32.mrf.mxu0
    %v661 = vadd.f32 0.0, %v660
    %662 = vdwg.mxu0
    %663 = vmatpush.msra.mxu0 0.0
    %664 = vmatpush.msra.mxu0 0.0
    %665 = vmatpush.msra.mxu0 0.0
    %666 = vmatpush.msra.mxu0 0.0
    %667 = vmatpush.msra.mxu0 0.0
    %668 = vmatpush.msra.mxu0 0.0
    %669 = vmatpush.msra.mxu0 0.0
    %670 = vmatpush.msra.mxu0 0.0
    %671 = vmatpush.msra.mxu0 0.0
    %672 = vmatpush.msra.mxu0 0.0
    %673 = vmatpush.msra.mxu0 0.0
    %674 = vmatpush.msra.mxu0 0.0
    %675 = vmatpush.msra.mxu0 0.0
    %676 = vmatpush.msra.mxu0 0.0
    %677 = vmatpush.msra.mxu0 0.0
    %678 = vmatpush.msra.mxu0 %v618
    %679 = vmatmul.f32.gmra.mxu0 %v609
    %v680 = vpop.f32.mrf.mxu0
    %v681 = vadd.f32 0.0, %v680
    %682 = vdwg.mxu0
    %683 = vmatpush.msra.mxu0 0.0
    %684 = vmatpush.msra.mxu0 0.0
    %685 = vmatpush.msra.mxu0 0.0
    %686 = vmatpush.msra.mxu0 0.0
    %687 = vmatpush.msra.mxu0 0.0
    %688 = vmatpush.msra.mxu0 0.0
    %689 = vmatpush.msra.mxu0 0.0
    %690 = vmatpush.msra.mxu0 0.0
    %691 = vmatpush.msra.mxu0 0.0
    %692 = vmatpush.msra.mxu0 0.0
    %693 = vmatpush.msra.mxu0 0.0
    %694 = vmatpush.msra.mxu0 0.0
    %695 = vmatpush.msra.mxu0 0.0
    %696 = vmatpush.msra.mxu0 0.0
    %697 = vmatpush.msra.mxu0 0.0
    %698 = vmatpush.msra.mxu0 %v621
    %699 = vmatmul.f32.gmra.mxu0 %v609
    %v700 = vpop.f32.mrf.mxu0
    %v701 = vadd.f32 0.0, %v700
    %702 = vdwg.mxu0
    %v703 = vadd.f32 %v558, %v641
    %v704 = vadd.f32 %v559, %v661
    %v705 = vadd.f32 %v560, %v681
    %v706 = vadd.f32 %v561, %v701
    %vm707 = vmand %vm564, %vm418
    %vm708 = vmand %vm707, %vm420
    %709 = vst [vmem:[#allocation1] ss:$2 sm:$0xff] %v21
    %s710 = scalar_lea.vmem [#allocation1], 16
    %711 = vst [vmem:[%s710] ss:$2 sm:$0xff] %v22
    %v712 = vld.sshfl [vmem:[#allocation1] sm:$0xff pattern:$0x75316420]
    %v713 = vld.sshfl [vmem:[#allocation1 + $0x8] sm:$0xff pattern:$0x75316420]
    %v714 = vld.sshfl [vmem:[#allocation1 + $0x10] sm:$0xff pattern:$0x75316420]
    %v715 = vld.sshfl [vmem:[#allocation1 + $0x18] sm:$0xff pattern:$0x75316420]
    %720 = vrot.lane.b32.xlu0 %v712, 127
    %v721 = vpop.permute.xlu0 %720
    %722 = vrot.lane.b32.xlu0 %v713, 127
    %v723 = vpop.permute.xlu0 %722
    %724 = vrot.lane.b32.xlu0 %v714, 127
    %v725 = vpop.permute.xlu0 %724
    %726 = vrot.lane.b32.xlu0 %v715, 127
    %v727 = vpop.permute.xlu0 %726
    %vm728 = vcmp.lt.s32.totalorder %v56, 127
    %v729 = vsel %vm728, %v725, %v727
    %v730 = vsel %vm728, %v723, %v725
    %v731 = vsel %vm728, %v721, %v723
    %v732 = vsel %vm728, %v727, %v721
    %v733 = vsel %vm708, 1, 0
    %v734 = vcvt.s32.f32 %v733
    %v736 = vperm.slane %v734, 0
    %v737 = vperm.slane %v734, 1
    %v738 = vperm.slane %v734, 2
    %v739 = vperm.slane %v734, 3
    %v744 = vmul.f32 %v731, %v736
    %v745 = vmul.f32 %v730, %v737
    %v746 = vmul.f32 %v729, %v738
    %v747 = vmul.f32 %v732, %v739
    %s748 = scalar_lea.vmem %s2, 40
    %v749 = vld [vmem:[%s748] sm:$0xff]
    %v751 = vsel %vm78, %v749, 0
    %v754 = vsel %vm82, %v744, 0
    %v757 = vsel %vm82, %v745, 0
    %v760 = vsel %vm82, %v746, 0
    %v763 = vsel %vm82, %v747, 0
    %765 = vmatpush.msra.mxu0 0.0
    %766 = vmatpush.msra.mxu0 0.0
    %767 = vmatpush.msra.mxu0 0.0
    %768 = vmatpush.msra.mxu0 0.0
    %769 = vmatpush.msra.mxu0 0.0
    %770 = vmatpush.msra.mxu0 0.0
    %771 = vmatpush.msra.mxu0 0.0
    %772 = vmatpush.msra.mxu0 0.0
    %773 = vmatpush.msra.mxu0 0.0
    %774 = vmatpush.msra.mxu0 0.0
    %775 = vmatpush.msra.mxu0 0.0
    %776 = vmatpush.msra.mxu0 0.0
    %777 = vmatpush.msra.mxu0 0.0
    %778 = vmatpush.msra.mxu0 0.0
    %779 = vmatpush.msra.mxu0 0.0
    %780 = vmatpush.msra.mxu0 %v754
    %781 = vmatmul.f32.gmra.mxu0 %v751
    %v782 = vpop.f32.mrf.mxu0
    %v783 = vadd.f32 0.0, %v782
    %784 = vdwg.mxu0
    %785 = vmatpush.msra.mxu0 0.0
    %786 = vmatpush.msra.mxu0 0.0
    %787 = vmatpush.msra.mxu0 0.0
    %788 = vmatpush.msra.mxu0 0.0
    %789 = vmatpush.msra.mxu0 0.0
    %790 = vmatpush.msra.mxu0 0.0
    %791 = vmatpush.msra.mxu0 0.0
    %792 = vmatpush.msra.mxu0 0.0
    %793 = vmatpush.msra.mxu0 0.0
    %794 = vmatpush.msra.mxu0 0.0
    %795 = vmatpush.msra.mxu0 0.0
    %796 = vmatpush.msra.mxu0 0.0
    %797 = vmatpush.msra.mxu0 0.0
    %798 = vmatpush.msra.mxu0 0.0
    %799 = vmatpush.msra.mxu0 0.0
    %800 = vmatpush.msra.mxu0 %v757
    %801 = vmatmul.f32.gmra.mxu0 %v751
    %v802 = vpop.f32.mrf.mxu0
    %v803 = vadd.f32 0.0, %v802
    %804 = vdwg.mxu0
    %805 = vmatpush.msra.mxu0 0.0
    %806 = vmatpush.msra.mxu0 0.0
    %807 = vmatpush.msra.mxu0 0.0
    %808 = vmatpush.msra.mxu0 0.0
    %809 = vmatpush.msra.mxu0 0.0
    %810 = vmatpush.msra.mxu0 0.0
    %811 = vmatpush.msra.mxu0 0.0
    %812 = vmatpush.msra.mxu0 0.0
    %813 = vmatpush.msra.mxu0 0.0
    %814 = vmatpush.msra.mxu0 0.0
    %815 = vmatpush.msra.mxu0 0.0
    %816 = vmatpush.msra.mxu0 0.0
    %817 = vmatpush.msra.mxu0 0.0
    %818 = vmatpush.msra.mxu0 0.0
    %819 = vmatpush.msra.mxu0 0.0
    %820 = vmatpush.msra.mxu0 %v760
    %821 = vmatmul.f32.gmra.mxu0 %v751
    %v822 = vpop.f32.mrf.mxu0
    %v823 = vadd.f32 0.0, %v822
    %824 = vdwg.mxu0
    %825 = vmatpush.msra.mxu0 0.0
    %826 = vmatpush.msra.mxu0 0.0
    %827 = vmatpush.msra.mxu0 0.0
    %828 = vmatpush.msra.mxu0 0.0
    %829 = vmatpush.msra.mxu0 0.0
    %830 = vmatpush.msra.mxu0 0.0
    %831 = vmatpush.msra.mxu0 0.0
    %832 = vmatpush.msra.mxu0 0.0
    %833 = vmatpush.msra.mxu0 0.0
    %834 = vmatpush.msra.mxu0 0.0
    %835 = vmatpush.msra.mxu0 0.0
    %836 = vmatpush.msra.mxu0 0.0
    %837 = vmatpush.msra.mxu0 0.0
    %838 = vmatpush.msra.mxu0 0.0
    %839 = vmatpush.msra.mxu0 0.0
    %840 = vmatpush.msra.mxu0 %v763
    %841 = vmatmul.f32.gmra.mxu0 %v751
    %v842 = vpop.f32.mrf.mxu0
    %v843 = vadd.f32 0.0, %v842
    %844 = vdwg.mxu0
    %v845 = vadd.f32 %v703, %v783
    %v846 = vadd.f32 %v704, %v803
    %v847 = vadd.f32 %v705, %v823
    %v848 = vadd.f32 %v706, %v843
    %v849 = vadd.s32 %v18, 1
    %vm850 = vcmp.ge.s32.totalorder %v849, 0
    %vm851 = vcmp.lt.s32.totalorder %v849, 16
    %vm852 = vmand %vm850, %vm851
    %vm853 = vmand %vm852, %vm30
    %vm854 = vmand %vm853, %vm32
    %855 = vst [vmem:[#allocation1] ss:$2 sm:$0xff] %v21
    %s856 = scalar_lea.vmem [#allocation1], 16
    %857 = vst [vmem:[%s856] ss:$2 sm:$0xff] %v22
    %v858 = vld.sshfl [vmem:[#allocation1] sm:$0xff pattern:$0x75316420]
    %v859 = vld.sshfl [vmem:[#allocation1 + $0x8] sm:$0xff pattern:$0x75316420]
    %v860 = vld.sshfl [vmem:[#allocation1 + $0x10] sm:$0xff pattern:$0x75316420]
    %v861 = vld.sshfl [vmem:[#allocation1 + $0x18] sm:$0xff pattern:$0x75316420]
    %866 = vrot.lane.b32.xlu0 %v858, 113
    %v867 = vpop.permute.xlu0 %866
    %868 = vrot.lane.b32.xlu0 %v859, 113
    %v869 = vpop.permute.xlu0 %868
    %870 = vrot.lane.b32.xlu0 %v860, 113
    %v871 = vpop.permute.xlu0 %870
    %872 = vrot.lane.b32.xlu0 %v861, 113
    %v873 = vpop.permute.xlu0 %872
    %vm874 = vcmp.lt.s32.totalorder %v56, 113
    %v875 = vsel %vm874, %v871, %v873
    %v876 = vsel %vm874, %v869, %v871
    %v877 = vsel %vm874, %v867, %v869
    %v878 = vsel %vm874, %v873, %v867
    %v879 = vsel %vm854, 1, 0
    %v880 = vcvt.s32.f32 %v879
    %v882 = vperm.slane %v880, 0
    %v883 = vperm.slane %v880, 1
    %v884 = vperm.slane %v880, 2
    %v885 = vperm.slane %v880, 3
    %v890 = vmul.f32 %v877, %v882
    %v891 = vmul.f32 %v876, %v883
    %v892 = vmul.f32 %v875, %v884
    %v893 = vmul.f32 %v878, %v885
    %s894 = scalar_lea.vmem %s2, 48
    %v895 = vld [vmem:[%s894] sm:$0xff]
    %v897 = vsel %vm78, %v895, 0
    %v900 = vsel %vm82, %v890, 0
    %v903 = vsel %vm82, %v891, 0
    %v906 = vsel %vm82, %v892, 0
    %v909 = vsel %vm82, %v893, 0
    %911 = vmatpush.msra.mxu0 0.0
    %912 = vmatpush.msra.mxu0 0.0
    %913 = vmatpush.msra.mxu0 0.0
    %914 = vmatpush.msra.mxu0 0.0
    %915 = vmatpush.msra.mxu0 0.0
    %916 = vmatpush.msra.mxu0 0.0
    %917 = vmatpush.msra.mxu0 0.0
    %918 = vmatpush.msra.mxu0 0.0
    %919 = vmatpush.msra.mxu0 0.0
    %920 = vmatpush.msra.mxu0 0.0
    %921 = vmatpush.msra.mxu0 0.0
    %922 = vmatpush.msra.mxu0 0.0
    %923 = vmatpush.msra.mxu0 0.0
    %924 = vmatpush.msra.mxu0 0.0
    %925 = vmatpush.msra.mxu0 0.0
    %926 = vmatpush.msra.mxu0 %v900
    %927 = vmatmul.f32.gmra.mxu0 %v897
    %v928 = vpop.f32.mrf.mxu0
    %v929 = vadd.f32 0.0, %v928
    %930 = vdwg.mxu0
    %931 = vmatpush.msra.mxu0 0.0
    %932 = vmatpush.msra.mxu0 0.0
    %933 = vmatpush.msra.mxu0 0.0
    %934 = vmatpush.msra.mxu0 0.0
    %935 = vmatpush.msra.mxu0 0.0
    %936 = vmatpush.msra.mxu0 0.0
    %937 = vmatpush.msra.mxu0 0.0
    %938 = vmatpush.msra.mxu0 0.0
    %939 = vmatpush.msra.mxu0 0.0
    %940 = vmatpush.msra.mxu0 0.0
    %941 = vmatpush.msra.mxu0 0.0
    %942 = vmatpush.msra.mxu0 0.0
    %943 = vmatpush.msra.mxu0 0.0
    %944 = vmatpush.msra.mxu0 0.0
    %945 = vmatpush.msra.mxu0 0.0
    %946 = vmatpush.msra.mxu0 %v903
    %947 = vmatmul.f32.gmra.mxu0 %v897
    %v948 = vpop.f32.mrf.mxu0
    %v949 = vadd.f32 0.0, %v948
    %950 = vdwg.mxu0
    %951 = vmatpush.msra.mxu0 0.0
    %952 = vmatpush.msra.mxu0 0.0
    %953 = vmatpush.msra.mxu0 0.0
    %954 = vmatpush.msra.mxu0 0.0
    %955 = vmatpush.msra.mxu0 0.0
    %956 = vmatpush.msra.mxu0 0.0
    %957 = vmatpush.msra.mxu0 0.0
    %958 = vmatpush.msra.mxu0 0.0
    %959 = vmatpush.msra.mxu0 0.0
    %960 = vmatpush.msra.mxu0 0.0
    %961 = vmatpush.msra.mxu0 0.0
    %962 = vmatpush.msra.mxu0 0.0
    %963 = vmatpush.msra.mxu0 0.0
    %964 = vmatpush.msra.mxu0 0.0
    %965 = vmatpush.msra.mxu0 0.0
    %966 = vmatpush.msra.mxu0 %v906
    %967 = vmatmul.f32.gmra.mxu0 %v897
    %v968 = vpop.f32.mrf.mxu0
    %v969 = vadd.f32 0.0, %v968
    %970 = vdwg.mxu0
    %971 = vmatpush.msra.mxu0 0.0
    %972 = vmatpush.msra.mxu0 0.0
    %973 = vmatpush.msra.mxu0 0.0
    %974 = vmatpush.msra.mxu0 0.0
    %975 = vmatpush.msra.mxu0 0.0
    %976 = vmatpush.msra.mxu0 0.0
    %977 = vmatpush.msra.mxu0 0.0
    %978 = vmatpush.msra.mxu0 0.0
    %979 = vmatpush.msra.mxu0 0.0
    %980 = vmatpush.msra.mxu0 0.0
    %981 = vmatpush.msra.mxu0 0.0
    %982 = vmatpush.msra.mxu0 0.0
    %983 = vmatpush.msra.mxu0 0.0
    %984 = vmatpush.msra.mxu0 0.0
    %985 = vmatpush.msra.mxu0 0.0
    %986 = vmatpush.msra.mxu0 %v909
    %987 = vmatmul.f32.gmra.mxu0 %v897
    %v988 = vpop.f32.mrf.mxu0
    %v989 = vadd.f32 0.0, %v988
    %990 = vdwg.mxu0
    %v991 = vadd.f32 %v845, %v929
    %v992 = vadd.f32 %v846, %v949
    %v993 = vadd.f32 %v847, %v969
    %v994 = vadd.f32 %v848, %v989
    %vm995 = vmand %vm852, %vm273
    %vm996 = vmand %vm995, %vm275
    %997 = vst [vmem:[#allocation1] ss:$2 sm:$0xff] %v21
    %s998 = scalar_lea.vmem [#allocation1], 16
    %999 = vst [vmem:[%s998] ss:$2 sm:$0xff] %v22
    %v1000 = vld.sshfl [vmem:[#allocation1] sm:$0xff pattern:$0x75316420]
    %v1001 = vld.sshfl [vmem:[#allocation1 + $0x8] sm:$0xff pattern:$0x75316420]
    %v1002 = vld.sshfl [vmem:[#allocation1 + $0x10] sm:$0xff pattern:$0x75316420]
    %v1003 = vld.sshfl [vmem:[#allocation1 + $0x18] sm:$0xff pattern:$0x75316420]
    %1008 = vrot.lane.b32.xlu0 %v1000, 112
    %v1009 = vpop.permute.xlu0 %1008
    %1010 = vrot.lane.b32.xlu0 %v1001, 112
    %v1011 = vpop.permute.xlu0 %1010
    %1012 = vrot.lane.b32.xlu0 %v1002, 112
    %v1013 = vpop.permute.xlu0 %1012
    %1014 = vrot.lane.b32.xlu0 %v1003, 112
    %v1015 = vpop.permute.xlu0 %1014
    %vm1016 = vcmp.lt.s32.totalorder %v56, 112
    %v1017 = vsel %vm1016, %v1013, %v1015
    %v1018 = vsel %vm1016, %v1011, %v1013
    %v1019 = vsel %vm1016, %v1009, %v1011
    %v1020 = vsel %vm1016, %v1015, %v1009
    %v1021 = vsel %vm996, 1, 0
    %v1022 = vcvt.s32.f32 %v1021
    %v1024 = vperm.slane %v1022, 0
    %v1025 = vperm.slane %v1022, 1
    %v1026 = vperm.slane %v1022, 2
    %v1027 = vperm.slane %v1022, 3
    %v1032 = vmul.f32 %v1019, %v1024
    %v1033 = vmul.f32 %v1018, %v1025
    %v1034 = vmul.f32 %v1017, %v1026
    %v1035 = vmul.f32 %v1020, %v1027
    %s1036 = scalar_lea.vmem %s2, 56
    %v1037 = vld [vmem:[%s1036] sm:$0xff]
    %v1039 = vsel %vm78, %v1037, 0
    %v1042 = vsel %vm82, %v1032, 0
    %v1045 = vsel %vm82, %v1033, 0
    %v1048 = vsel %vm82, %v1034, 0
    %v1051 = vsel %vm82, %v1035, 0
    %1053 = vmatpush.msra.mxu0 0.0
    %1054 = vmatpush.msra.mxu0 0.0
    %1055 = vmatpush.msra.mxu0 0.0
    %1056 = vmatpush.msra.mxu0 0.0
    %1057 = vmatpush.msra.mxu0 0.0
    %1058 = vmatpush.msra.mxu0 0.0
    %1059 = vmatpush.msra.mxu0 0.0
    %1060 = vmatpush.msra.mxu0 0.0
    %1061 = vmatpush.msra.mxu0 0.0
    %1062 = vmatpush.msra.mxu0 0.0
    %1063 = vmatpush.msra.mxu0 0.0
    %1064 = vmatpush.msra.mxu0 0.0
    %1065 = vmatpush.msra.mxu0 0.0
    %1066 = vmatpush.msra.mxu0 0.0
    %1067 = vmatpush.msra.mxu0 0.0
    %1068 = vmatpush.msra.mxu0 %v1042
    %1069 = vmatmul.f32.gmra.mxu0 %v1039
    %v1070 = vpop.f32.mrf.mxu0
    %v1071 = vadd.f32 0.0, %v1070
    %1072 = vdwg.mxu0
    %1073 = vmatpush.msra.mxu0 0.0
    %1074 = vmatpush.msra.mxu0 0.0
    %1075 = vmatpush.msra.mxu0 0.0
    %1076 = vmatpush.msra.mxu0 0.0
    %1077 = vmatpush.msra.mxu0 0.0
    %1078 = vmatpush.msra.mxu0 0.0
    %1079 = vmatpush.msra.mxu0 0.0
    %1080 = vmatpush.msra.mxu0 0.0
    %1081 = vmatpush.msra.mxu0 0.0
    %1082 = vmatpush.msra.mxu0 0.0
    %1083 = vmatpush.msra.mxu0 0.0
    %1084 = vmatpush.msra.mxu0 0.0
    %1085 = vmatpush.msra.mxu0 0.0
    %1086 = vmatpush.msra.mxu0 0.0
    %1087 = vmatpush.msra.mxu0 0.0
    %1088 = vmatpush.msra.mxu0 %v1045
    %1089 = vmatmul.f32.gmra.mxu0 %v1039
    %v1090 = vpop.f32.mrf.mxu0
    %v1091 = vadd.f32 0.0, %v1090
    %1092 = vdwg.mxu0
    %1093 = vmatpush.msra.mxu0 0.0
    %1094 = vmatpush.msra.mxu0 0.0
    %1095 = vmatpush.msra.mxu0 0.0
    %1096 = vmatpush.msra.mxu0 0.0
    %1097 = vmatpush.msra.mxu0 0.0
    %1098 = vmatpush.msra.mxu0 0.0
    %1099 = vmatpush.msra.mxu0 0.0
    %1100 = vmatpush.msra.mxu0 0.0
    %1101 = vmatpush.msra.mxu0 0.0
    %1102 = vmatpush.msra.mxu0 0.0
    %1103 = vmatpush.msra.mxu0 0.0
    %1104 = vmatpush.msra.mxu0 0.0
    %1105 = vmatpush.msra.mxu0 0.0
    %1106 = vmatpush.msra.mxu0 0.0
    %1107 = vmatpush.msra.mxu0 0.0
    %1108 = vmatpush.msra.mxu0 %v1048
    %1109 = vmatmul.f32.gmra.mxu0 %v1039
    %v1110 = vpop.f32.mrf.mxu0
    %v1111 = vadd.f32 0.0, %v1110
    %1112 = vdwg.mxu0
    %1113 = vmatpush.msra.mxu0 0.0
    %1114 = vmatpush.msra.mxu0 0.0
    %1115 = vmatpush.msra.mxu0 0.0
    %1116 = vmatpush.msra.mxu0 0.0
    %1117 = vmatpush.msra.mxu0 0.0
    %1118 = vmatpush.msra.mxu0 0.0
    %1119 = vmatpush.msra.mxu0 0.0
    %1120 = vmatpush.msra.mxu0 0.0
    %1121 = vmatpush.msra.mxu0 0.0
    %1122 = vmatpush.msra.mxu0 0.0
    %1123 = vmatpush.msra.mxu0 0.0
    %1124 = vmatpush.msra.mxu0 0.0
    %1125 = vmatpush.msra.mxu0 0.0
    %1126 = vmatpush.msra.mxu0 0.0
    %1127 = vmatpush.msra.mxu0 0.0
    %1128 = vmatpush.msra.mxu0 %v1051
    %1129 = vmatmul.f32.gmra.mxu0 %v1039
    %v1130 = vpop.f32.mrf.mxu0
    %v1131 = vadd.f32 0.0, %v1130
    %1132 = vdwg.mxu0
    %v1133 = vadd.f32 %v991, %v1071
    %v1134 = vadd.f32 %v992, %v1091
    %v1135 = vadd.f32 %v993, %v1111
    %v1136 = vadd.f32 %v994, %v1131
    %vm1137 = vmand %vm852, %vm418
    %vm1138 = vmand %vm1137, %vm420
    %1139 = vst [vmem:[#allocation1] ss:$2 sm:$0xff] %v21
    %s1140 = scalar_lea.vmem [#allocation1], 16
    %1141 = vst [vmem:[%s1140] ss:$2 sm:$0xff] %v22
    %v1142 = vld.sshfl [vmem:[#allocation1] sm:$0xff pattern:$0x75316420]
    %v1143 = vld.sshfl [vmem:[#allocation1 + $0x8] sm:$0xff pattern:$0x75316420]
    %v1144 = vld.sshfl [vmem:[#allocation1 + $0x10] sm:$0xff pattern:$0x75316420]
    %v1145 = vld.sshfl [vmem:[#allocation1 + $0x18] sm:$0xff pattern:$0x75316420]
    %1150 = vrot.lane.b32.xlu0 %v1142, 111
    %v1151 = vpop.permute.xlu0 %1150
    %1152 = vrot.lane.b32.xlu0 %v1143, 111
    %v1153 = vpop.permute.xlu0 %1152
    %1154 = vrot.lane.b32.xlu0 %v1144, 111
    %v1155 = vpop.permute.xlu0 %1154
    %1156 = vrot.lane.b32.xlu0 %v1145, 111
    %v1157 = vpop.permute.xlu0 %1156
    %vm1158 = vcmp.lt.s32.totalorder %v56, 111
    %v1159 = vsel %vm1158, %v1155, %v1157
    %v1160 = vsel %vm1158, %v1153, %v1155
    %v1161 = vsel %vm1158, %v1151, %v1153
    %v1162 = vsel %vm1158, %v1157, %v1151
    %v1163 = vsel %vm1138, 1, 0
    %v1164 = vcvt.s32.f32 %v1163
    %v1166 = vperm.slane %v1164, 0
    %v1167 = vperm.slane %v1164, 1
    %v1168 = vperm.slane %v1164, 2
    %v1169 = vperm.slane %v1164, 3
    %v1174 = vmul.f32 %v1161, %v1166
    %v1175 = vmul.f32 %v1160, %v1167
    %v1176 = vmul.f32 %v1159, %v1168
    %v1177 = vmul.f32 %v1162, %v1169
    %s1178 = scalar_lea.vmem %s2, 64
    %v1179 = vld [vmem:[%s1178] sm:$0xff]
    %v1181 = vsel %vm78, %v1179, 0
    %v1184 = vsel %vm82, %v1174, 0
    %v1187 = vsel %vm82, %v1175, 0
    %v1190 = vsel %vm82, %v1176, 0
    %v1193 = vsel %vm82, %v1177, 0
    %1195 = vmatpush.msra.mxu0 0.0
    %1196 = vmatpush.msra.mxu0 0.0
    %1197 = vmatpush.msra.mxu0 0.0
    %1198 = vmatpush.msra.mxu0 0.0
    %1199 = vmatpush.msra.mxu0 0.0
    %1200 = vmatpush.msra.mxu0 0.0
    %1201 = vmatpush.msra.mxu0 0.0
    %1202 = vmatpush.msra.mxu0 0.0
    %1203 = vmatpush.msra.mxu0 0.0
    %1204 = vmatpush.msra.mxu0 0.0
    %1205 = vmatpush.msra.mxu0 0.0
    %1206 = vmatpush.msra.mxu0 0.0
    %1207 = vmatpush.msra.mxu0 0.0
    %1208 = vmatpush.msra.mxu0 0.0
    %1209 = vmatpush.msra.mxu0 0.0
    %1210 = vmatpush.msra.mxu0 %v1184
    %1211 = vmatmul.f32.gmra.mxu0 %v1181
    %v1212 = vpop.f32.mrf.mxu0
    %v1213 = vadd.f32 0.0, %v1212
    %1214 = vdwg.mxu0
    %1215 = vmatpush.msra.mxu0 0.0
    %1216 = vmatpush.msra.mxu0 0.0
    %1217 = vmatpush.msra.mxu0 0.0
    %1218 = vmatpush.msra.mxu0 0.0
    %1219 = vmatpush.msra.mxu0 0.0
    %1220 = vmatpush.msra.mxu0 0.0
    %1221 = vmatpush.msra.mxu0 0.0
    %1222 = vmatpush.msra.mxu0 0.0
    %1223 = vmatpush.msra.mxu0 0.0
    %1224 = vmatpush.msra.mxu0 0.0
    %1225 = vmatpush.msra.mxu0 0.0
    %1226 = vmatpush.msra.mxu0 0.0
    %1227 = vmatpush.msra.mxu0 0.0
    %1228 = vmatpush.msra.mxu0 0.0
    %1229 = vmatpush.msra.mxu0 0.0
    %1230 = vmatpush.msra.mxu0 %v1187
    %1231 = vmatmul.f32.gmra.mxu0 %v1181
    %v1232 = vpop.f32.mrf.mxu0
    %v1233 = vadd.f32 0.0, %v1232
    %1234 = vdwg.mxu0
    %1235 = vmatpush.msra.mxu0 0.0
    %1236 = vmatpush.msra.mxu0 0.0
    %1237 = vmatpush.msra.mxu0 0.0
    %1238 = vmatpush.msra.mxu0 0.0
    %1239 = vmatpush.msra.mxu0 0.0
    %1240 = vmatpush.msra.mxu0 0.0
    %1241 = vmatpush.msra.mxu0 0.0
    %1242 = vmatpush.msra.mxu0 0.0
    %1243 = vmatpush.msra.mxu0 0.0
    %1244 = vmatpush.msra.mxu0 0.0
    %1245 = vmatpush.msra.mxu0 0.0
    %1246 = vmatpush.msra.mxu0 0.0
    %1247 = vmatpush.msra.mxu0 0.0
    %1248 = vmatpush.msra.mxu0 0.0
    %1249 = vmatpush.msra.mxu0 0.0
    %1250 = vmatpush.msra.mxu0 %v1190
    %1251 = vmatmul.f32.gmra.mxu0 %v1181
    %v1252 = vpop.f32.mrf.mxu0
    %v1253 = vadd.f32 0.0, %v1252
    %1254 = vdwg.mxu0
    %1255 = vmatpush.msra.mxu0 0.0
    %1256 = vmatpush.msra.mxu0 0.0
    %1257 = vmatpush.msra.mxu0 0.0
    %1258 = vmatpush.msra.mxu0 0.0
    %1259 = vmatpush.msra.mxu0 0.0
    %1260 = vmatpush.msra.mxu0 0.0
    %1261 = vmatpush.msra.mxu0 0.0
    %1262 = vmatpush.msra.mxu0 0.0
    %1263 = vmatpush.msra.mxu0 0.0
    %1264 = vmatpush.msra.mxu0 0.0
    %1265 = vmatpush.msra.mxu0 0.0
    %1266 = vmatpush.msra.mxu0 0.0
    %1267 = vmatpush.msra.mxu0 0.0
    %1268 = vmatpush.msra.mxu0 0.0
    %1269 = vmatpush.msra.mxu0 0.0
    %1270 = vmatpush.msra.mxu0 %v1193
    %1271 = vmatmul.f32.gmra.mxu0 %v1181
    %v1272 = vpop.f32.mrf.mxu0
    %v1273 = vadd.f32 0.0, %v1272
    %1274 = vdwg.mxu0
    %v1275 = vadd.f32 %v1133, %v1213
    %v1276 = vadd.f32 %v1134, %v1233
    %v1277 = vadd.f32 %v1135, %v1253
    %v1278 = vadd.f32 %v1136, %v1273
    %vm1279 = vcmp.gt.f32.partialorder %v1275, 0.0
    %vm1280 = vcmp.gt.f32.partialorder %v1276, 0.0
    %vm1281 = vcmp.gt.f32.partialorder %v1277, 0.0
    %vm1282 = vcmp.gt.f32.partialorder %v1278, 0.0
    %v1283 = vmul.f32 %v1275, 0.2
    %v1284 = vmul.f32 %v1276, 0.2
    %v1285 = vmul.f32 %v1277, 0.2
    %v1286 = vmul.f32 %v1278, 0.2
    %v1287 = vsel %vm1279, %v1275, %v1283
    %v1288 = vsel %vm1280, %v1276, %v1284
    %v1289 = vsel %vm1281, %v1277, %v1285
    %v1290 = vsel %vm1282, %v1278, %v1286
    %s1291 = scalar_lea.vmem %s3, 32
    %v1292 = vld [vmem:[%s1291] sm:$0xff]
    %1293 = vrot.lane.b32.xlu0 %v1287, 17
    %v1294 = vpop.permute.xlu0 %1293
    %1295 = vrot.lane.b32.xlu0 %v1288, 17
    %v1296 = vpop.permute.xlu0 %1295
    %1297 = vrot.lane.b32.xlu0 %v1289, 17
    %v1298 = vpop.permute.xlu0 %1297
    %1299 = vrot.lane.b32.xlu0 %v1290, 17
    %v1300 = vpop.permute.xlu0 %1299
    %v1301 = vsel %vm57, %v1298, %v1300
    %v1302 = vsel %vm57, %v1296, %v1298
    %v1303 = vsel %vm57, %v1294, %v1296
    %v1304 = vsel %vm57, %v1300, %v1294
    %v1305 = vmul.f32 %v1304, %v65
    %v1306 = vmul.f32 %v1303, %v66
    %v1307 = vmul.f32 %v1302, %v67
    %v1308 = vmul.f32 %v1301, %v68
    %v1309 = vld [vmem:[%s3] sm:$0xff]
    %vm1310 = vcmask 64512
    %v1312 = vsel %vm1310, %v1309, 0
    %1314 = vmatpush.msra.mxu0 0.0
    %1315 = vmatpush.msra.mxu0 0.0
    %1316 = vmatpush.msra.mxu0 0.0
    %1317 = vmatpush.msra.mxu0 0.0
    %1318 = vmatpush.msra.mxu0 0.0
    %1319 = vmatpush.msra.mxu0 0.0
    %1320 = vmatpush.msra.mxu0 0.0
    %1321 = vmatpush.msra.mxu0 0.0
    %1322 = vmatpush.msra.mxu0 0.0
    %1323 = vmatpush.msra.mxu0 0.0
    %1324 = vmatpush.msra.mxu0 0.0
    %1325 = vmatpush.msra.mxu0 0.0
    %1326 = vmatpush.msra.mxu0 0.0
    %1327 = vmatpush.msra.mxu0 0.0
    %1328 = vmatpush.msra.mxu0 0.0
    %1329 = vmatpush.msra.mxu0 %v1305
    %1330 = vmatmul.f32.gmra.mxu0 %v1312
    %v1331 = vpop.f32.mrf.mxu0
    %v1332 = vadd.f32 0.0, %v1331
    %1333 = vdwg.mxu0
    %1334 = vmatpush.msra.mxu0 0.0
    %1335 = vmatpush.msra.mxu0 0.0
    %1336 = vmatpush.msra.mxu0 0.0
    %1337 = vmatpush.msra.mxu0 0.0
    %1338 = vmatpush.msra.mxu0 0.0
    %1339 = vmatpush.msra.mxu0 0.0
    %1340 = vmatpush.msra.mxu0 0.0
    %1341 = vmatpush.msra.mxu0 0.0
    %1342 = vmatpush.msra.mxu0 0.0
    %1343 = vmatpush.msra.mxu0 0.0
    %1344 = vmatpush.msra.mxu0 0.0
    %1345 = vmatpush.msra.mxu0 0.0
    %1346 = vmatpush.msra.mxu0 0.0
    %1347 = vmatpush.msra.mxu0 0.0
    %1348 = vmatpush.msra.mxu0 0.0
    %1349 = vmatpush.msra.mxu0 %v1306
    %1350 = vmatmul.f32.gmra.mxu0 %v1312
    %v1351 = vpop.f32.mrf.mxu0
    %v1352 = vadd.f32 0.0, %v1351
    %1353 = vdwg.mxu0
    %1354 = vmatpush.msra.mxu0 0.0
    %1355 = vmatpush.msra.mxu0 0.0
    %1356 = vmatpush.msra.mxu0 0.0
    %1357 = vmatpush.msra.mxu0 0.0
    %1358 = vmatpush.msra.mxu0 0.0
    %1359 = vmatpush.msra.mxu0 0.0
    %1360 = vmatpush.msra.mxu0 0.0
    %1361 = vmatpush.msra.mxu0 0.0
    %1362 = vmatpush.msra.mxu0 0.0
    %1363 = vmatpush.msra.mxu0 0.0
    %1364 = vmatpush.msra.mxu0 0.0
    %1365 = vmatpush.msra.mxu0 0.0
    %1366 = vmatpush.msra.mxu0 0.0
    %1367 = vmatpush.msra.mxu0 0.0
    %1368 = vmatpush.msra.mxu0 0.0
    %1369 = vmatpush.msra.mxu0 %v1307
    %1370 = vmatmul.f32.gmra.mxu0 %v1312
    %v1371 = vpop.f32.mrf.mxu0
    %v1372 = vadd.f32 0.0, %v1371
    %1373 = vdwg.mxu0
    %1374 = vmatpush.msra.mxu0 0.0
    %1375 = vmatpush.msra.mxu0 0.0
    %1376 = vmatpush.msra.mxu0 0.0
    %1377 = vmatpush.msra.mxu0 0.0
    %1378 = vmatpush.msra.mxu0 0.0
    %1379 = vmatpush.msra.mxu0 0.0
    %1380 = vmatpush.msra.mxu0 0.0
    %1381 = vmatpush.msra.mxu0 0.0
    %1382 = vmatpush.msra.mxu0 0.0
    %1383 = vmatpush.msra.mxu0 0.0
    %1384 = vmatpush.msra.mxu0 0.0
    %1385 = vmatpush.msra.mxu0 0.0
    %1386 = vmatpush.msra.mxu0 0.0
    %1387 = vmatpush.msra.mxu0 0.0
    %1388 = vmatpush.msra.mxu0 0.0
    %1389 = vmatpush.msra.mxu0 %v1308
    %1390 = vmatmul.f32.gmra.mxu0 %v1312
    %v1391 = vpop.f32.mrf.mxu0
    %v1392 = vadd.f32 0.0, %v1391
    %1393 = vdwg.mxu0
    %v1395 = vsel %vm1310, %v1292, 0
    %1397 = vmatpush.msra.mxu0 0.0
    %1398 = vmatpush.msra.mxu0 0.0
    %1399 = vmatpush.msra.mxu0 0.0
    %1400 = vmatpush.msra.mxu0 0.0
    %1401 = vmatpush.msra.mxu0 0.0
    %1402 = vmatpush.msra.mxu0 0.0
    %1403 = vmatpush.msra.mxu0 0.0
    %1404 = vmatpush.msra.mxu0 0.0
    %1405 = vmatpush.msra.mxu0 0.0
    %1406 = vmatpush.msra.mxu0 0.0
    %1407 = vmatpush.msra.mxu0 0.0
    %1408 = vmatpush.msra.mxu0 0.0
    %1409 = vmatpush.msra.mxu0 0.0
    %1410 = vmatpush.msra.mxu0 0.0
    %1411 = vmatpush.msra.mxu0 0.0
    %1412 = vmatpush.msra.mxu0 %v1287
    %1413 = vmatmul.f32.gmra.mxu0 %v1395
    %v1414 = vpop.f32.mrf.mxu0
    %v1415 = vadd.f32 %v1332, %v1414
    %1416 = vdwg.mxu0
    %1417 = vmatpush.msra.mxu0 0.0
    %1418 = vmatpush.msra.mxu0 0.0
    %1419 = vmatpush.msra.mxu0 0.0
    %1420 = vmatpush.msra.mxu0 0.0
    %1421 = vmatpush.msra.mxu0 0.0
    %1422 = vmatpush.msra.mxu0 0.0
    %1423 = vmatpush.msra.mxu0 0.0
    %1424 = vmatpush.msra.mxu0 0.0
    %1425 = vmatpush.msra.mxu0 0.0
    %1426 = vmatpush.msra.mxu0 0.0
    %1427 = vmatpush.msra.mxu0 0.0
    %1428 = vmatpush.msra.mxu0 0.0
    %1429 = vmatpush.msra.mxu0 0.0
    %1430 = vmatpush.msra.mxu0 0.0
    %1431 = vmatpush.msra.mxu0 0.0
    %1432 = vmatpush.msra.mxu0 %v1288
    %1433 = vmatmul.f32.gmra.mxu0 %v1395
    %v1434 = vpop.f32.mrf.mxu0
    %v1435 = vadd.f32 %v1352, %v1434
    %1436 = vdwg.mxu0
    %1437 = vmatpush.msra.mxu0 0.0
    %1438 = vmatpush.msra.mxu0 0.0
    %1439 = vmatpush.msra.mxu0 0.0
    %1440 = vmatpush.msra.mxu0 0.0
    %1441 = vmatpush.msra.mxu0 0.0
    %1442 = vmatpush.msra.mxu0 0.0
    %1443 = vmatpush.msra.mxu0 0.0
    %1444 = vmatpush.msra.mxu0 0.0
    %1445 = vmatpush.msra.mxu0 0.0
    %1446 = vmatpush.msra.mxu0 0.0
    %1447 = vmatpush.msra.mxu0 0.0
    %1448 = vmatpush.msra.mxu0 0.0
    %1449 = vmatpush.msra.mxu0 0.0
    %1450 = vmatpush.msra.mxu0 0.0
    %1451 = vmatpush.msra.mxu0 0.0
    %1452 = vmatpush.msra.mxu0 %v1289
    %1453 = vmatmul.f32.gmra.mxu0 %v1395
    %v1454 = vpop.f32.mrf.mxu0
    %v1455 = vadd.f32 %v1372, %v1454
    %1456 = vdwg.mxu0
    %1457 = vmatpush.msra.mxu0 0.0
    %1458 = vmatpush.msra.mxu0 0.0
    %1459 = vmatpush.msra.mxu0 0.0
    %1460 = vmatpush.msra.mxu0 0.0
    %1461 = vmatpush.msra.mxu0 0.0
    %1462 = vmatpush.msra.mxu0 0.0
    %1463 = vmatpush.msra.mxu0 0.0
    %1464 = vmatpush.msra.mxu0 0.0
    %1465 = vmatpush.msra.mxu0 0.0
    %1466 = vmatpush.msra.mxu0 0.0
    %1467 = vmatpush.msra.mxu0 0.0
    %1468 = vmatpush.msra.mxu0 0.0
    %1469 = vmatpush.msra.mxu0 0.0
    %1470 = vmatpush.msra.mxu0 0.0
    %1471 = vmatpush.msra.mxu0 0.0
    %1472 = vmatpush.msra.mxu0 %v1290
    %1473 = vmatmul.f32.gmra.mxu0 %v1395
    %v1474 = vpop.f32.mrf.mxu0
    %v1475 = vadd.f32 %v1392, %v1474
    %1476 = vdwg.mxu0
    %1477 = vrot.lane.b32.xlu0 %v1287, 16
    %v1478 = vpop.permute.xlu0 %1477
    %1479 = vrot.lane.b32.xlu0 %v1288, 16
    %v1480 = vpop.permute.xlu0 %1479
    %1481 = vrot.lane.b32.xlu0 %v1289, 16
    %v1482 = vpop.permute.xlu0 %1481
    %1483 = vrot.lane.b32.xlu0 %v1290, 16
    %v1484 = vpop.permute.xlu0 %1483
    %v1485 = vsel %vm296, %v1482, %v1484
    %v1486 = vsel %vm296, %v1480, %v1482
    %v1487 = vsel %vm296, %v1478, %v1480
    %v1488 = vsel %vm296, %v1484, %v1478
    %v1489 = vmul.f32 %v1488, %v304
    %v1490 = vmul.f32 %v1487, %v305
    %v1491 = vmul.f32 %v1486, %v306
    %v1492 = vmul.f32 %v1485, %v307
    %s1493 = scalar_lea.vmem %s3, 8
    %v1494 = vld [vmem:[%s1493] sm:$0xff]
    %v1496 = vsel %vm1310, %v1494, 0
    %1498 = vmatpush.msra.mxu0 0.0
    %1499 = vmatpush.msra.mxu0 0.0
    %1500 = vmatpush.msra.mxu0 0.0
    %1501 = vmatpush.msra.mxu0 0.0
    %1502 = vmatpush.msra.mxu0 0.0
    %1503 = vmatpush.msra.mxu0 0.0
    %1504 = vmatpush.msra.mxu0 0.0
    %1505 = vmatpush.msra.mxu0 0.0
    %1506 = vmatpush.msra.mxu0 0.0
    %1507 = vmatpush.msra.mxu0 0.0
    %1508 = vmatpush.msra.mxu0 0.0
    %1509 = vmatpush.msra.mxu0 0.0
    %1510 = vmatpush.msra.mxu0 0.0
    %1511 = vmatpush.msra.mxu0 0.0
    %1512 = vmatpush.msra.mxu0 0.0
    %1513 = vmatpush.msra.mxu0 %v1489
    %1514 = vmatmul.f32.gmra.mxu0 %v1496
    %v1515 = vpop.f32.mrf.mxu0
    %v1516 = vadd.f32 0.0, %v1515
    %1517 = vdwg.mxu0
    %1518 = vmatpush.msra.mxu0 0.0
    %1519 = vmatpush.msra.mxu0 0.0
    %1520 = vmatpush.msra.mxu0 0.0
    %1521 = vmatpush.msra.mxu0 0.0
    %1522 = vmatpush.msra.mxu0 0.0
    %1523 = vmatpush.msra.mxu0 0.0
    %1524 = vmatpush.msra.mxu0 0.0
    %1525 = vmatpush.msra.mxu0 0.0
    %1526 = vmatpush.msra.mxu0 0.0
    %1527 = vmatpush.msra.mxu0 0.0
    %1528 = vmatpush.msra.mxu0 0.0
    %1529 = vmatpush.msra.mxu0 0.0
    %1530 = vmatpush.msra.mxu0 0.0
    %1531 = vmatpush.msra.mxu0 0.0
    %1532 = vmatpush.msra.mxu0 0.0
    %1533 = vmatpush.msra.mxu0 %v1490
    %1534 = vmatmul.f32.gmra.mxu0 %v1496
    %v1535 = vpop.f32.mrf.mxu0
    %v1536 = vadd.f32 0.0, %v1535
    %1537 = vdwg.mxu0
    %1538 = vmatpush.msra.mxu0 0.0
    %1539 = vmatpush.msra.mxu0 0.0
    %1540 = vmatpush.msra.mxu0 0.0
    %1541 = vmatpush.msra.mxu0 0.0
    %1542 = vmatpush.msra.mxu0 0.0
    %1543 = vmatpush.msra.mxu0 0.0
    %1544 = vmatpush.msra.mxu0 0.0
    %1545 = vmatpush.msra.mxu0 0.0
    %1546 = vmatpush.msra.mxu0 0.0
    %1547 = vmatpush.msra.mxu0 0.0
    %1548 = vmatpush.msra.mxu0 0.0
    %1549 = vmatpush.msra.mxu0 0.0
    %1550 = vmatpush.msra.mxu0 0.0
    %1551 = vmatpush.msra.mxu0 0.0
    %1552 = vmatpush.msra.mxu0 0.0
    %1553 = vmatpush.msra.mxu0 %v1491
    %1554 = vmatmul.f32.gmra.mxu0 %v1496
    %v1555 = vpop.f32.mrf.mxu0
    %v1556 = vadd.f32 0.0, %v1555
    %1557 = vdwg.mxu0
    %1558 = vmatpush.msra.mxu0 0.0
    %1559 = vmatpush.msra.mxu0 0.0
    %1560 = vmatpush.msra.mxu0 0.0
    %1561 = vmatpush.msra.mxu0 0.0
    %1562 = vmatpush.msra.mxu0 0.0
    %1563 = vmatpush.msra.mxu0 0.0
    %1564 = vmatpush.msra.mxu0 0.0
    %1565 = vmatpush.msra.mxu0 0.0
    %1566 = vmatpush.msra.mxu0 0.0
    %1567 = vmatpush.msra.mxu0 0.0
    %1568 = vmatpush.msra.mxu0 0.0
    %1569 = vmatpush.msra.mxu0 0.0
    %1570 = vmatpush.msra.mxu0 0.0
    %1571 = vmatpush.msra.mxu0 0.0
    %1572 = vmatpush.msra.mxu0 0.0
    %1573 = vmatpush.msra.mxu0 %v1492
    %1574 = vmatmul.f32.gmra.mxu0 %v1496
    %v1575 = vpop.f32.mrf.mxu0
    %v1576 = vadd.f32 0.0, %v1575
    %1577 = vdwg.mxu0
    %v1578 = vadd.f32 %v1415, %v1516
    %v1579 = vadd.f32 %v1435, %v1536
    %v1580 = vadd.f32 %v1455, %v1556
    %v1581 = vadd.f32 %v1475, %v1576
    %1582 = vrot.lane.b32.xlu0 %v1287, 15
    %v1583 = vpop.permute.xlu0 %1582
    %1584 = vrot.lane.b32.xlu0 %v1288, 15
    %v1585 = vpop.permute.xlu0 %1584
    %1586 = vrot.lane.b32.xlu0 %v1289, 15
    %v1587 = vpop.permute.xlu0 %1586
    %1588 = vrot.lane.b32.xlu0 %v1290, 15
    %v1589 = vpop.permute.xlu0 %1588
    %v1590 = vsel %vm441, %v1587, %v1589
    %v1591 = vsel %vm441, %v1585, %v1587
    %v1592 = vsel %vm441, %v1583, %v1585
    %v1593 = vsel %vm441, %v1589, %v1583
    %v1594 = vmul.f32 %v1593, %v449
    %v1595 = vmul.f32 %v1592, %v450
    %v1596 = vmul.f32 %v1591, %v451
    %v1597 = vmul.f32 %v1590, %v452
    %s1598 = scalar_lea.vmem %s3, 16
    %v1599 = vld [vmem:[%s1598] sm:$0xff]
    %v1601 = vsel %vm1310, %v1599, 0
    %1603 = vmatpush.msra.mxu0 0.0
    %1604 = vmatpush.msra.mxu0 0.0
    %1605 = vmatpush.msra.mxu0 0.0
    %1606 = vmatpush.msra.mxu0 0.0
    %1607 = vmatpush.msra.mxu0 0.0
    %1608 = vmatpush.msra.mxu0 0.0
    %1609 = vmatpush.msra.mxu0 0.0
    %1610 = vmatpush.msra.mxu0 0.0
    %1611 = vmatpush.msra.mxu0 0.0
    %1612 = vmatpush.msra.mxu0 0.0
    %1613 = vmatpush.msra.mxu0 0.0
    %1614 = vmatpush.msra.mxu0 0.0
    %1615 = vmatpush.msra.mxu0 0.0
    %1616 = vmatpush.msra.mxu0 0.0
    %1617 = vmatpush.msra.mxu0 0.0
    %1618 = vmatpush.msra.mxu0 %v1594
    %1619 = vmatmul.f32.gmra.mxu0 %v1601
    %v1620 = vpop.f32.mrf.mxu0
    %v1621 = vadd.f32 0.0, %v1620
    %1622 = vdwg.mxu0
    %1623 = vmatpush.msra.mxu0 0.0
    %1624 = vmatpush.msra.mxu0 0.0
    %1625 = vmatpush.msra.mxu0 0.0
    %1626 = vmatpush.msra.mxu0 0.0
    %1627 = vmatpush.msra.mxu0 0.0
    %1628 = vmatpush.msra.mxu0 0.0
    %1629 = vmatpush.msra.mxu0 0.0
    %1630 = vmatpush.msra.mxu0 0.0
    %1631 = vmatpush.msra.mxu0 0.0
    %1632 = vmatpush.msra.mxu0 0.0
    %1633 = vmatpush.msra.mxu0 0.0
    %1634 = vmatpush.msra.mxu0 0.0
    %1635 = vmatpush.msra.mxu0 0.0
    %1636 = vmatpush.msra.mxu0 0.0
    %1637 = vmatpush.msra.mxu0 0.0
    %1638 = vmatpush.msra.mxu0 %v1595
    %1639 = vmatmul.f32.gmra.mxu0 %v1601
    %v1640 = vpop.f32.mrf.mxu0
    %v1641 = vadd.f32 0.0, %v1640
    %1642 = vdwg.mxu0
    %1643 = vmatpush.msra.mxu0 0.0
    %1644 = vmatpush.msra.mxu0 0.0
    %1645 = vmatpush.msra.mxu0 0.0
    %1646 = vmatpush.msra.mxu0 0.0
    %1647 = vmatpush.msra.mxu0 0.0
    %1648 = vmatpush.msra.mxu0 0.0
    %1649 = vmatpush.msra.mxu0 0.0
    %1650 = vmatpush.msra.mxu0 0.0
    %1651 = vmatpush.msra.mxu0 0.0
    %1652 = vmatpush.msra.mxu0 0.0
    %1653 = vmatpush.msra.mxu0 0.0
    %1654 = vmatpush.msra.mxu0 0.0
    %1655 = vmatpush.msra.mxu0 0.0
    %1656 = vmatpush.msra.mxu0 0.0
    %1657 = vmatpush.msra.mxu0 0.0
    %1658 = vmatpush.msra.mxu0 %v1596
    %1659 = vmatmul.f32.gmra.mxu0 %v1601
    %v1660 = vpop.f32.mrf.mxu0
    %v1661 = vadd.f32 0.0, %v1660
    %1662 = vdwg.mxu0
    %1663 = vmatpush.msra.mxu0 0.0
    %1664 = vmatpush.msra.mxu0 0.0
    %1665 = vmatpush.msra.mxu0 0.0
    %1666 = vmatpush.msra.mxu0 0.0
    %1667 = vmatpush.msra.mxu0 0.0
    %1668 = vmatpush.msra.mxu0 0.0
    %1669 = vmatpush.msra.mxu0 0.0
    %1670 = vmatpush.msra.mxu0 0.0
    %1671 = vmatpush.msra.mxu0 0.0
    %1672 = vmatpush.msra.mxu0 0.0
    %1673 = vmatpush.msra.mxu0 0.0
    %1674 = vmatpush.msra.mxu0 0.0
    %1675 = vmatpush.msra.mxu0 0.0
    %1676 = vmatpush.msra.mxu0 0.0
    %1677 = vmatpush.msra.mxu0 0.0
    %1678 = vmatpush.msra.mxu0 %v1597
    %1679 = vmatmul.f32.gmra.mxu0 %v1601
    %v1680 = vpop.f32.mrf.mxu0
    %v1681 = vadd.f32 0.0, %v1680
    %1682 = vdwg.mxu0
    %v1683 = vadd.f32 %v1578, %v1621
    %v1684 = vadd.f32 %v1579, %v1641
    %v1685 = vadd.f32 %v1580, %v1661
    %v1686 = vadd.f32 %v1581, %v1681
    %1687 = vrot.lane.b32.xlu0 %v1287, 1
    %v1688 = vpop.permute.xlu0 %1687
    %1689 = vrot.lane.b32.xlu0 %v1288, 1
    %v1690 = vpop.permute.xlu0 %1689
    %1691 = vrot.lane.b32.xlu0 %v1289, 1
    %v1692 = vpop.permute.xlu0 %1691
    %1693 = vrot.lane.b32.xlu0 %v1290, 1
    %v1694 = vpop.permute.xlu0 %1693
    %v1695 = vsel %vm586, %v1692, %v1694
    %v1696 = vsel %vm586, %v1690, %v1692
    %v1697 = vsel %vm586, %v1688, %v1690
    %v1698 = vsel %vm586, %v1694, %v1688
    %v1699 = vmul.f32 %v1698, %v594
    %v1700 = vmul.f32 %v1697, %v595
    %v1701 = vmul.f32 %v1696, %v596
    %v1702 = vmul.f32 %v1695, %v597
    %s1703 = scalar_lea.vmem %s3, 24
    %v1704 = vld [vmem:[%s1703] sm:$0xff]
    %v1706 = vsel %vm1310, %v1704, 0
    %1708 = vmatpush.msra.mxu0 0.0
    %1709 = vmatpush.msra.mxu0 0.0
    %1710 = vmatpush.msra.mxu0 0.0
    %1711 = vmatpush.msra.mxu0 0.0
    %1712 = vmatpush.msra.mxu0 0.0
    %1713 = vmatpush.msra.mxu0 0.0
    %1714 = vmatpush.msra.mxu0 0.0
    %1715 = vmatpush.msra.mxu0 0.0
    %1716 = vmatpush.msra.mxu0 0.0
    %1717 = vmatpush.msra.mxu0 0.0
    %1718 = vmatpush.msra.mxu0 0.0
    %1719 = vmatpush.msra.mxu0 0.0
    %1720 = vmatpush.msra.mxu0 0.0
    %1721 = vmatpush.msra.mxu0 0.0
    %1722 = vmatpush.msra.mxu0 0.0
    %1723 = vmatpush.msra.mxu0 %v1699
    %1724 = vmatmul.f32.gmra.mxu0 %v1706
    %v1725 = vpop.f32.mrf.mxu0
    %v1726 = vadd.f32 0.0, %v1725
    %1727 = vdwg.mxu0
    %1728 = vmatpush.msra.mxu0 0.0
    %1729 = vmatpush.msra.mxu0 0.0
    %1730 = vmatpush.msra.mxu0 0.0
    %1731 = vmatpush.msra.mxu0 0.0
    %1732 = vmatpush.msra.mxu0 0.0
    %1733 = vmatpush.msra.mxu0 0.0
    %1734 = vmatpush.msra.mxu0 0.0
    %1735 = vmatpush.msra.mxu0 0.0
    %1736 = vmatpush.msra.mxu0 0.0
    %1737 = vmatpush.msra.mxu0 0.0
    %1738 = vmatpush.msra.mxu0 0.0
    %1739 = vmatpush.msra.mxu0 0.0
    %1740 = vmatpush.msra.mxu0 0.0
    %1741 = vmatpush.msra.mxu0 0.0
    %1742 = vmatpush.msra.mxu0 0.0
    %1743 = vmatpush.msra.mxu0 %v1700
    %1744 = vmatmul.f32.gmra.mxu0 %v1706
    %v1745 = vpop.f32.mrf.mxu0
    %v1746 = vadd.f32 0.0, %v1745
    %1747 = vdwg.mxu0
    %1748 = vmatpush.msra.mxu0 0.0
    %1749 = vmatpush.msra.mxu0 0.0
    %1750 = vmatpush.msra.mxu0 0.0
    %1751 = vmatpush.msra.mxu0 0.0
    %1752 = vmatpush.msra.mxu0 0.0
    %1753 = vmatpush.msra.mxu0 0.0
    %1754 = vmatpush.msra.mxu0 0.0
    %1755 = vmatpush.msra.mxu0 0.0
    %1756 = vmatpush.msra.mxu0 0.0
    %1757 = vmatpush.msra.mxu0 0.0
    %1758 = vmatpush.msra.mxu0 0.0
    %1759 = vmatpush.msra.mxu0 0.0
    %1760 = vmatpush.msra.mxu0 0.0
    %1761 = vmatpush.msra.mxu0 0.0
    %1762 = vmatpush.msra.mxu0 0.0
    %1763 = vmatpush.msra.mxu0 %v1701
    %1764 = vmatmul.f32.gmra.mxu0 %v1706
    %v1765 = vpop.f32.mrf.mxu0
    %v1766 = vadd.f32 0.0, %v1765
    %1767 = vdwg.mxu0
    %1768 = vmatpush.msra.mxu0 0.0
    %1769 = vmatpush.msra.mxu0 0.0
    %1770 = vmatpush.msra.mxu0 0.0
    %1771 = vmatpush.msra.mxu0 0.0
    %1772 = vmatpush.msra.mxu0 0.0
    %1773 = vmatpush.msra.mxu0 0.0
    %1774 = vmatpush.msra.mxu0 0.0
    %1775 = vmatpush.msra.mxu0 0.0
    %1776 = vmatpush.msra.mxu0 0.0
    %1777 = vmatpush.msra.mxu0 0.0
    %1778 = vmatpush.msra.mxu0 0.0
    %1779 = vmatpush.msra.mxu0 0.0
    %1780 = vmatpush.msra.mxu0 0.0
    %1781 = vmatpush.msra.mxu0 0.0
    %1782 = vmatpush.msra.mxu0 0.0
    %1783 = vmatpush.msra.mxu0 %v1702
    %1784 = vmatmul.f32.gmra.mxu0 %v1706
    %v1785 = vpop.f32.mrf.mxu0
    %v1786 = vadd.f32 0.0, %v1785
    %1787 = vdwg.mxu0
    %v1788 = vadd.f32 %v1683, %v1726
    %v1789 = vadd.f32 %v1684, %v1746
    %v1790 = vadd.f32 %v1685, %v1766
    %v1791 = vadd.f32 %v1686, %v1786
    %1792 = vrot.lane.b32.xlu0 %v1287, 127
    %v1793 = vpop.permute.xlu0 %1792
    %1794 = vrot.lane.b32.xlu0 %v1288, 127
    %v1795 = vpop.permute.xlu0 %1794
    %1796 = vrot.lane.b32.xlu0 %v1289, 127
    %v1797 = vpop.permute.xlu0 %1796
    %1798 = vrot.lane.b32.xlu0 %v1290, 127
    %v1799 = vpop.permute.xlu0 %1798
    %v1800 = vsel %vm728, %v1797, %v1799
    %v1801 = vsel %vm728, %v1795, %v1797
    %v1802 = vsel %vm728, %v1793, %v1795
    %v1803 = vsel %vm728, %v1799, %v1793
    %v1804 = vmul.f32 %v1802, %v736
    %v1805 = vmul.f32 %v1801, %v737
    %v1806 = vmul.f32 %v1800, %v738
    %v1807 = vmul.f32 %v1803, %v739
    %s1808 = scalar_lea.vmem %s3, 40
    %v1809 = vld [vmem:[%s1808] sm:$0xff]
    %v1811 = vsel %vm1310, %v1809, 0
    %1813 = vmatpush.msra.mxu0 0.0
    %1814 = vmatpush.msra.mxu0 0.0
    %1815 = vmatpush.msra.mxu0 0.0
    %1816 = vmatpush.msra.mxu0 0.0
    %1817 = vmatpush.msra.mxu0 0.0
    %1818 = vmatpush.msra.mxu0 0.0
    %1819 = vmatpush.msra.mxu0 0.0
    %1820 = vmatpush.msra.mxu0 0.0
    %1821 = vmatpush.msra.mxu0 0.0
    %1822 = vmatpush.msra.mxu0 0.0
    %1823 = vmatpush.msra.mxu0 0.0
    %1824 = vmatpush.msra.mxu0 0.0
    %1825 = vmatpush.msra.mxu0 0.0
    %1826 = vmatpush.msra.mxu0 0.0
    %1827 = vmatpush.msra.mxu0 0.0
    %1828 = vmatpush.msra.mxu0 %v1804
    %1829 = vmatmul.f32.gmra.mxu0 %v1811
    %v1830 = vpop.f32.mrf.mxu0
    %v1831 = vadd.f32 0.0, %v1830
    %1832 = vdwg.mxu0
    %1833 = vmatpush.msra.mxu0 0.0
    %1834 = vmatpush.msra.mxu0 0.0
    %1835 = vmatpush.msra.mxu0 0.0
    %1836 = vmatpush.msra.mxu0 0.0
    %1837 = vmatpush.msra.mxu0 0.0
    %1838 = vmatpush.msra.mxu0 0.0
    %1839 = vmatpush.msra.mxu0 0.0
    %1840 = vmatpush.msra.mxu0 0.0
    %1841 = vmatpush.msra.mxu0 0.0
    %1842 = vmatpush.msra.mxu0 0.0
    %1843 = vmatpush.msra.mxu0 0.0
    %1844 = vmatpush.msra.mxu0 0.0
    %1845 = vmatpush.msra.mxu0 0.0
    %1846 = vmatpush.msra.mxu0 0.0
    %1847 = vmatpush.msra.mxu0 0.0
    %1848 = vmatpush.msra.mxu0 %v1805
    %1849 = vmatmul.f32.gmra.mxu0 %v1811
    %v1850 = vpop.f32.mrf.mxu0
    %v1851 = vadd.f32 0.0, %v1850
    %1852 = vdwg.mxu0
    %1853 = vmatpush.msra.mxu0 0.0
    %1854 = vmatpush.msra.mxu0 0.0
    %1855 = vmatpush.msra.mxu0 0.0
    %1856 = vmatpush.msra.mxu0 0.0
    %1857 = vmatpush.msra.mxu0 0.0
    %1858 = vmatpush.msra.mxu0 0.0
    %1859 = vmatpush.msra.mxu0 0.0
    %1860 = vmatpush.msra.mxu0 0.0
    %1861 = vmatpush.msra.mxu0 0.0
    %1862 = vmatpush.msra.mxu0 0.0
    %1863 = vmatpush.msra.mxu0 0.0
    %1864 = vmatpush.msra.mxu0 0.0
    %1865 = vmatpush.msra.mxu0 0.0
    %1866 = vmatpush.msra.mxu0 0.0
    %1867 = vmatpush.msra.mxu0 0.0
    %1868 = vmatpush.msra.mxu0 %v1806
    %1869 = vmatmul.f32.gmra.mxu0 %v1811
    %v1870 = vpop.f32.mrf.mxu0
    %v1871 = vadd.f32 0.0, %v1870
    %1872 = vdwg.mxu0
    %1873 = vmatpush.msra.mxu0 0.0
    %1874 = vmatpush.msra.mxu0 0.0
    %1875 = vmatpush.msra.mxu0 0.0
    %1876 = vmatpush.msra.mxu0 0.0
    %1877 = vmatpush.msra.mxu0 0.0
    %1878 = vmatpush.msra.mxu0 0.0
    %1879 = vmatpush.msra.mxu0 0.0
    %1880 = vmatpush.msra.mxu0 0.0
    %1881 = vmatpush.msra.mxu0 0.0
    %1882 = vmatpush.msra.mxu0 0.0
    %1883 = vmatpush.msra.mxu0 0.0
    %1884 = vmatpush.msra.mxu0 0.0
    %1885 = vmatpush.msra.mxu0 0.0
    %1886 = vmatpush.msra.mxu0 0.0
    %1887 = vmatpush.msra.mxu0 0.0
    %1888 = vmatpush.msra.mxu0 %v1807
    %1889 = vmatmul.f32.gmra.mxu0 %v1811
    %v1890 = vpop.f32.mrf.mxu0
    %v1891 = vadd.f32 0.0, %v1890
    %1892 = vdwg.mxu0
    %v1893 = vadd.f32 %v1788, %v1831
    %v1894 = vadd.f32 %v1789, %v1851
    %v1895 = vadd.f32 %v1790, %v1871
    %v1896 = vadd.f32 %v1791, %v1891
    %1897 = vrot.lane.b32.xlu0 %v1287, 113
    %v1898 = vpop.permute.xlu0 %1897
    %1899 = vrot.lane.b32.xlu0 %v1288, 113
    %v1900 = vpop.permute.xlu0 %1899
    %1901 = vrot.lane.b32.xlu0 %v1289, 113
    %v1902 = vpop.permute.xlu0 %1901
    %1903 = vrot.lane.b32.xlu0 %v1290, 113
    %v1904 = vpop.permute.xlu0 %1903
    %v1905 = vsel %vm874, %v1902, %v1904
    %v1906 = vsel %vm874, %v1900, %v1902
    %v1907 = vsel %vm874, %v1898, %v1900
    %v1908 = vsel %vm874, %v1904, %v1898
    %v1909 = vmul.f32 %v1907, %v882
    %v1910 = vmul.f32 %v1906, %v883
    %v1911 = vmul.f32 %v1905, %v884
    %v1912 = vmul.f32 %v1908, %v885
    %s1913 = scalar_lea.vmem %s3, 48
    %v1914 = vld [vmem:[%s1913] sm:$0xff]
    %v1916 = vsel %vm1310, %v1914, 0
    %1918 = vmatpush.msra.mxu0 0.0
    %1919 = vmatpush.msra.mxu0 0.0
    %1920 = vmatpush.msra.mxu0 0.0
    %1921 = vmatpush.msra.mxu0 0.0
    %1922 = vmatpush.msra.mxu0 0.0
    %1923 = vmatpush.msra.mxu0 0.0
    %1924 = vmatpush.msra.mxu0 0.0
    %1925 = vmatpush.msra.mxu0 0.0
    %1926 = vmatpush.msra.mxu0 0.0
    %1927 = vmatpush.msra.mxu0 0.0
    %1928 = vmatpush.msra.mxu0 0.0
    %1929 = vmatpush.msra.mxu0 0.0
    %1930 = vmatpush.msra.mxu0 0.0
    %1931 = vmatpush.msra.mxu0 0.0
    %1932 = vmatpush.msra.mxu0 0.0
    %1933 = vmatpush.msra.mxu0 %v1909
    %1934 = vmatmul.f32.gmra.mxu0 %v1916
    %v1935 = vpop.f32.mrf.mxu0
    %v1936 = vadd.f32 0.0, %v1935
    %1937 = vdwg.mxu0
    %1938 = vmatpush.msra.mxu0 0.0
    %1939 = vmatpush.msra.mxu0 0.0
    %1940 = vmatpush.msra.mxu0 0.0
    %1941 = vmatpush.msra.mxu0 0.0
    %1942 = vmatpush.msra.mxu0 0.0
    %1943 = vmatpush.msra.mxu0 0.0
    %1944 = vmatpush.msra.mxu0 0.0
    %1945 = vmatpush.msra.mxu0 0.0
    %1946 = vmatpush.msra.mxu0 0.0
    %1947 = vmatpush.msra.mxu0 0.0
    %1948 = vmatpush.msra.mxu0 0.0
    %1949 = vmatpush.msra.mxu0 0.0
    %1950 = vmatpush.msra.mxu0 0.0
    %1951 = vmatpush.msra.mxu0 0.0
    %1952 = vmatpush.msra.mxu0 0.0
    %1953 = vmatpush.msra.mxu0 %v1910
    %1954 = vmatmul.f32.gmra.mxu0 %v1916
    %v1955 = vpop.f32.mrf.mxu0
    %v1956 = vadd.f32 0.0, %v1955
    %1957 = vdwg.mxu0
    %1958 = vmatpush.msra.mxu0 0.0
    %1959 = vmatpush.msra.mxu0 0.0
    %1960 = vmatpush.msra.mxu0 0.0
    %1961 = vmatpush.msra.mxu0 0.0
    %1962 = vmatpush.msra.mxu0 0.0
    %1963 = vmatpush.msra.mxu0 0.0
    %1964 = vmatpush.msra.mxu0 0.0
    %1965 = vmatpush.msra.mxu0 0.0
    %1966 = vmatpush.msra.mxu0 0.0
    %1967 = vmatpush.msra.mxu0 0.0
    %1968 = vmatpush.msra.mxu0 0.0
    %1969 = vmatpush.msra.mxu0 0.0
    %1970 = vmatpush.msra.mxu0 0.0
    %1971 = vmatpush.msra.mxu0 0.0
    %1972 = vmatpush.msra.mxu0 0.0
    %1973 = vmatpush.msra.mxu0 %v1911
    %1974 = vmatmul.f32.gmra.mxu0 %v1916
    %v1975 = vpop.f32.mrf.mxu0
    %v1976 = vadd.f32 0.0, %v1975
    %1977 = vdwg.mxu0
    %1978 = vmatpush.msra.mxu0 0.0
    %1979 = vmatpush.msra.mxu0 0.0
    %1980 = vmatpush.msra.mxu0 0.0
    %1981 = vmatpush.msra.mxu0 0.0
    %1982 = vmatpush.msra.mxu0 0.0
    %1983 = vmatpush.msra.mxu0 0.0
    %1984 = vmatpush.msra.mxu0 0.0
    %1985 = vmatpush.msra.mxu0 0.0
    %1986 = vmatpush.msra.mxu0 0.0
    %1987 = vmatpush.msra.mxu0 0.0
    %1988 = vmatpush.msra.mxu0 0.0
    %1989 = vmatpush.msra.mxu0 0.0
    %1990 = vmatpush.msra.mxu0 0.0
    %1991 = vmatpush.msra.mxu0 0.0
    %1992 = vmatpush.msra.mxu0 0.0
    %1993 = vmatpush.msra.mxu0 %v1912
    %1994 = vmatmul.f32.gmra.mxu0 %v1916
    %v1995 = vpop.f32.mrf.mxu0
    %v1996 = vadd.f32 0.0, %v1995
    %1997 = vdwg.mxu0
    %v1998 = vadd.f32 %v1893, %v1936
    %v1999 = vadd.f32 %v1894, %v1956
    %v2000 = vadd.f32 %v1895, %v1976
    %v2001 = vadd.f32 %v1896, %v1996
    %2002 = vrot.lane.b32.xlu0 %v1287, 112
    %v2003 = vpop.permute.xlu0 %2002
    %2004 = vrot.lane.b32.xlu0 %v1288, 112
    %v2005 = vpop.permute.xlu0 %2004
    %2006 = vrot.lane.b32.xlu0 %v1289, 112
    %v2007 = vpop.permute.xlu0 %2006
    %2008 = vrot.lane.b32.xlu0 %v1290, 112
    %v2009 = vpop.permute.xlu0 %2008
    %v2010 = vsel %vm1016, %v2007, %v2009
    %v2011 = vsel %vm1016, %v2005, %v2007
    %v2012 = vsel %vm1016, %v2003, %v2005
    %v2013 = vsel %vm1016, %v2009, %v2003
    %v2014 = vmul.f32 %v2012, %v1024
    %v2015 = vmul.f32 %v2011, %v1025
    %v2016 = vmul.f32 %v2010, %v1026
    %v2017 = vmul.f32 %v2013, %v1027
    %s2018 = scalar_lea.vmem %s3, 56
    %v2019 = vld [vmem:[%s2018] sm:$0xff]
    %v2021 = vsel %vm1310, %v2019, 0
    %2023 = vmatpush.msra.mxu0 0.0
    %2024 = vmatpush.msra.mxu0 0.0
    %2025 = vmatpush.msra.mxu0 0.0
    %2026 = vmatpush.msra.mxu0 0.0
    %2027 = vmatpush.msra.mxu0 0.0
    %2028 = vmatpush.msra.mxu0 0.0
    %2029 = vmatpush.msra.mxu0 0.0
    %2030 = vmatpush.msra.mxu0 0.0
    %2031 = vmatpush.msra.mxu0 0.0
    %2032 = vmatpush.msra.mxu0 0.0
    %2033 = vmatpush.msra.mxu0 0.0
    %2034 = vmatpush.msra.mxu0 0.0
    %2035 = vmatpush.msra.mxu0 0.0
    %2036 = vmatpush.msra.mxu0 0.0
    %2037 = vmatpush.msra.mxu0 0.0
    %2038 = vmatpush.msra.mxu0 %v2014
    %2039 = vmatmul.f32.gmra.mxu0 %v2021
    %v2040 = vpop.f32.mrf.mxu0
    %v2041 = vadd.f32 0.0, %v2040
    %2042 = vdwg.mxu0
    %2043 = vmatpush.msra.mxu0 0.0
    %2044 = vmatpush.msra.mxu0 0.0
    %2045 = vmatpush.msra.mxu0 0.0
    %2046 = vmatpush.msra.mxu0 0.0
    %2047 = vmatpush.msra.mxu0 0.0
    %2048 = vmatpush.msra.mxu0 0.0
    %2049 = vmatpush.msra.mxu0 0.0
    %2050 = vmatpush.msra.mxu0 0.0
    %2051 = vmatpush.msra.mxu0 0.0
    %2052 = vmatpush.msra.mxu0 0.0
    %2053 = vmatpush.msra.mxu0 0.0
    %2054 = vmatpush.msra.mxu0 0.0
    %2055 = vmatpush.msra.mxu0 0.0
    %2056 = vmatpush.msra.mxu0 0.0
    %2057 = vmatpush.msra.mxu0 0.0
    %2058 = vmatpush.msra.mxu0 %v2015
    %2059 = vmatmul.f32.gmra.mxu0 %v2021
    %v2060 = vpop.f32.mrf.mxu0
    %v2061 = vadd.f32 0.0, %v2060
    %2062 = vdwg.mxu0
    %2063 = vmatpush.msra.mxu0 0.0
    %2064 = vmatpush.msra.mxu0 0.0
    %2065 = vmatpush.msra.mxu0 0.0
    %2066 = vmatpush.msra.mxu0 0.0
    %2067 = vmatpush.msra.mxu0 0.0
    %2068 = vmatpush.msra.mxu0 0.0
    %2069 = vmatpush.msra.mxu0 0.0
    %2070 = vmatpush.msra.mxu0 0.0
    %2071 = vmatpush.msra.mxu0 0.0
    %2072 = vmatpush.msra.mxu0 0.0
    %2073 = vmatpush.msra.mxu0 0.0
    %2074 = vmatpush.msra.mxu0 0.0
    %2075 = vmatpush.msra.mxu0 0.0
    %2076 = vmatpush.msra.mxu0 0.0
    %2077 = vmatpush.msra.mxu0 0.0
    %2078 = vmatpush.msra.mxu0 %v2016
    %2079 = vmatmul.f32.gmra.mxu0 %v2021
    %v2080 = vpop.f32.mrf.mxu0
    %v2081 = vadd.f32 0.0, %v2080
    %2082 = vdwg.mxu0
    %2083 = vmatpush.msra.mxu0 0.0
    %2084 = vmatpush.msra.mxu0 0.0
    %2085 = vmatpush.msra.mxu0 0.0
    %2086 = vmatpush.msra.mxu0 0.0
    %2087 = vmatpush.msra.mxu0 0.0
    %2088 = vmatpush.msra.mxu0 0.0
    %2089 = vmatpush.msra.mxu0 0.0
    %2090 = vmatpush.msra.mxu0 0.0
    %2091 = vmatpush.msra.mxu0 0.0
    %2092 = vmatpush.msra.mxu0 0.0
    %2093 = vmatpush.msra.mxu0 0.0
    %2094 = vmatpush.msra.mxu0 0.0
    %2095 = vmatpush.msra.mxu0 0.0
    %2096 = vmatpush.msra.mxu0 0.0
    %2097 = vmatpush.msra.mxu0 0.0
    %2098 = vmatpush.msra.mxu0 %v2017
    %2099 = vmatmul.f32.gmra.mxu0 %v2021
    %v2100 = vpop.f32.mrf.mxu0
    %v2101 = vadd.f32 0.0, %v2100
    %2102 = vdwg.mxu0
    %v2103 = vadd.f32 %v1998, %v2041
    %v2104 = vadd.f32 %v1999, %v2061
    %v2105 = vadd.f32 %v2000, %v2081
    %v2106 = vadd.f32 %v2001, %v2101
    %2107 = vrot.lane.b32.xlu0 %v1287, 111
    %v2108 = vpop.permute.xlu0 %2107
    %2109 = vrot.lane.b32.xlu0 %v1288, 111
    %v2110 = vpop.permute.xlu0 %2109
    %2111 = vrot.lane.b32.xlu0 %v1289, 111
    %v2112 = vpop.permute.xlu0 %2111
    %2113 = vrot.lane.b32.xlu0 %v1290, 111
    %v2114 = vpop.permute.xlu0 %2113
    %v2115 = vsel %vm1158, %v2112, %v2114
    %v2116 = vsel %vm1158, %v2110, %v2112
    %v2117 = vsel %vm1158, %v2108, %v2110
    %v2118 = vsel %vm1158, %v2114, %v2108
    %v2119 = vmul.f32 %v2117, %v1166
    %v2120 = vmul.f32 %v2116, %v1167
    %v2121 = vmul.f32 %v2115, %v1168
    %v2122 = vmul.f32 %v2118, %v1169
    %s2123 = scalar_lea.vmem %s3, 64
    %v2124 = vld [vmem:[%s2123] sm:$0xff]
    %v2126 = vsel %vm1310, %v2124, 0
    %2128 = vmatpush.msra.mxu0 0.0
    %2129 = vmatpush.msra.mxu0 0.0
    %2130 = vmatpush.msra.mxu0 0.0
    %2131 = vmatpush.msra.mxu0 0.0
    %2132 = vmatpush.msra.mxu0 0.0
    %2133 = vmatpush.msra.mxu0 0.0
    %2134 = vmatpush.msra.mxu0 0.0
    %2135 = vmatpush.msra.mxu0 0.0
    %2136 = vmatpush.msra.mxu0 0.0
    %2137 = vmatpush.msra.mxu0 0.0
    %2138 = vmatpush.msra.mxu0 0.0
    %2139 = vmatpush.msra.mxu0 0.0
    %2140 = vmatpush.msra.mxu0 0.0
    %2141 = vmatpush.msra.mxu0 0.0
    %2142 = vmatpush.msra.mxu0 0.0
    %2143 = vmatpush.msra.mxu0 %v2119
    %2144 = vmatmul.f32.gmra.mxu0 %v2126
    %v2145 = vpop.f32.mrf.mxu0
    %v2146 = vadd.f32 0.0, %v2145
    %2147 = vdwg.mxu0
    %2148 = vmatpush.msra.mxu0 0.0
    %2149 = vmatpush.msra.mxu0 0.0
    %2150 = vmatpush.msra.mxu0 0.0
    %2151 = vmatpush.msra.mxu0 0.0
    %2152 = vmatpush.msra.mxu0 0.0
    %2153 = vmatpush.msra.mxu0 0.0
    %2154 = vmatpush.msra.mxu0 0.0
    %2155 = vmatpush.msra.mxu0 0.0
    %2156 = vmatpush.msra.mxu0 0.0
    %2157 = vmatpush.msra.mxu0 0.0
    %2158 = vmatpush.msra.mxu0 0.0
    %2159 = vmatpush.msra.mxu0 0.0
    %2160 = vmatpush.msra.mxu0 0.0
    %2161 = vmatpush.msra.mxu0 0.0
    %2162 = vmatpush.msra.mxu0 0.0
    %2163 = vmatpush.msra.mxu0 %v2120
    %2164 = vmatmul.f32.gmra.mxu0 %v2126
    %v2165 = vpop.f32.mrf.mxu0
    %v2166 = vadd.f32 0.0, %v2165
    %2167 = vdwg.mxu0
    %2168 = vmatpush.msra.mxu0 0.0
    %2169 = vmatpush.msra.mxu0 0.0
    %2170 = vmatpush.msra.mxu0 0.0
    %2171 = vmatpush.msra.mxu0 0.0
    %2172 = vmatpush.msra.mxu0 0.0
    %2173 = vmatpush.msra.mxu0 0.0
    %2174 = vmatpush.msra.mxu0 0.0
    %2175 = vmatpush.msra.mxu0 0.0
    %2176 = vmatpush.msra.mxu0 0.0
    %2177 = vmatpush.msra.mxu0 0.0
    %2178 = vmatpush.msra.mxu0 0.0
    %2179 = vmatpush.msra.mxu0 0.0
    %2180 = vmatpush.msra.mxu0 0.0
    %2181 = vmatpush.msra.mxu0 0.0
    %2182 = vmatpush.msra.mxu0 0.0
    %2183 = vmatpush.msra.mxu0 %v2121
    %2184 = vmatmul.f32.gmra.mxu0 %v2126
    %v2185 = vpop.f32.mrf.mxu0
    %v2186 = vadd.f32 0.0, %v2185
    %2187 = vdwg.mxu0
    %2188 = vmatpush.msra.mxu0 0.0
    %2189 = vmatpush.msra.mxu0 0.0
    %2190 = vmatpush.msra.mxu0 0.0
    %2191 = vmatpush.msra.mxu0 0.0
    %2192 = vmatpush.msra.mxu0 0.0
    %2193 = vmatpush.msra.mxu0 0.0
    %2194 = vmatpush.msra.mxu0 0.0
    %2195 = vmatpush.msra.mxu0 0.0
    %2196 = vmatpush.msra.mxu0 0.0
    %2197 = vmatpush.msra.mxu0 0.0
    %2198 = vmatpush.msra.mxu0 0.0
    %2199 = vmatpush.msra.mxu0 0.0
    %2200 = vmatpush.msra.mxu0 0.0
    %2201 = vmatpush.msra.mxu0 0.0
    %2202 = vmatpush.msra.mxu0 0.0
    %2203 = vmatpush.msra.mxu0 %v2122
    %2204 = vmatmul.f32.gmra.mxu0 %v2126
    %v2205 = vpop.f32.mrf.mxu0
    %v2206 = vadd.f32 0.0, %v2205
    %2207 = vdwg.mxu0
    %v2208 = vadd.f32 %v2103, %v2146
    %v2209 = vadd.f32 %v2104, %v2166
    %v2210 = vadd.f32 %v2105, %v2186
    %v2211 = vadd.f32 %v2106, %v2206
    %vm2212 = vcmp.gt.f32.partialorder %v2208, 0.0
    %vm2213 = vcmp.gt.f32.partialorder %v2209, 0.0
    %vm2214 = vcmp.gt.f32.partialorder %v2210, 0.0
    %vm2215 = vcmp.gt.f32.partialorder %v2211, 0.0
    %v2216 = vmul.f32 %v2208, 0.2
    %v2217 = vmul.f32 %v2209, 0.2
    %v2218 = vmul.f32 %v2210, 0.2
    %v2219 = vmul.f32 %v2211, 0.2
    %v2220 = vsel %vm2212, %v2208, %v2216
    %v2221 = vsel %vm2213, %v2209, %v2217
    %v2222 = vsel %vm2214, %v2210, %v2218
    %v2223 = vsel %vm2215, %v2211, %v2219
    %2224 = vst [vmem:[#allocation2] sm:$0xff] %v2220
    %2225 = vst [vmem:[#allocation2 + $0x8] sm:$0xff] %v2221
    %2226 = vst [vmem:[#allocation2 + $0x10] sm:$0xff] %v2222
    %2227 = vst [vmem:[#allocation2 + $0x18] sm:$0xff] %v2223
    // Predicated region
    $region18: #{tpu_custom_call.1} parent=1 // pred_check
      _
    $region19: #{tpu_custom_call.1} parent=1 // pred_check_branch
      %2229 = sbr.rel (0) target = $region21
    $region20: #{tpu_custom_call.1} parent=1 // pred_region
      %2231 = vsyncadd [#allocation3], 0
      %s2233 = sshll.u32 [#allocation2], 4
      %s2234 = int_to_ptr.vmem [resolvable:$true] %s2233
      %s2235 = sshll.u32 %s4, 4
      %s2236 = int_to_ptr.hbm [resolvable:$true] %s2235
      %2238 = dma.vmem_to_hbm [thread:$0]  %s2234, 512, %s2236, [#allocation3]
    $region21: #{tpu_custom_call.1} parent=1 // pred_fallthru
      _
    // Predicated region
    $region22: #{tpu_custom_call.1} parent=1 // pred_check
      _
    $region23: #{tpu_custom_call.1} parent=1 // pred_check_branch
      %2240 = sbr.rel (0) target = $region25
    $region24: #{tpu_custom_call.1} parent=1 // pred_region
      %2242 = dma.done [#allocation3], 512
    $region25: #{tpu_custom_call.1} parent=1 // pred_fallthru
      _
    %2243 = vsyncpa [#allocation3], 1

</llo_original>
